<compile_context>
chip_gen: v6e
topology: v6e:2x2x1
jax: 0.10.0
libtpu: 0.0.40
codegen_flags: <defaults>
</compile_context>

<pallas_src>
import functools

import jax
import jax.numpy as jnp
from jax import lax
from jax.experimental import pallas as pl
from jax.experimental.pallas import tpu as pltpu

LANE = 128           # lane width / padded feature width for every matmul
_BN_EPS = 1e-5       # PyTorch BatchNorm1d eps
_EPS2 = 1e-24        # (F.normalize eps = 1e-12) ** 2


# ----------------------------- fused BYOL kernel -----------------------------

def _byol_train_kernel(patch_ref, w_ref, v_ref, loss_ref, feat_ref, *, n, hw, d):
    """Grid over the 2N images.  Every step: conv+ReLU+GAP for one image (online and
    target conv channels fused side-by-side).  Last step: both projector necks, the
    predictor head and the BYOL loss on the (2N, 128) pooled features."""
    i = pl.program_id(0)
    two_n = 2 * n

    # ---- phase 1 (every step): 3x3 conv as im2col matmul + ReLU + global avg pool ----
    y = jnp.dot(patch_ref[...], w_ref[0], preferred_element_type=jnp.float32)
    y = jnp.maximum(y + v_ref[0:1, :], 0.0)                      # (HW, 128) f32
    feat_ref[pl.ds(i, 1), :] = (
        jnp.sum(y, axis=0, keepdims=True) * jnp.float32(1.0 / hw))   # row i of feats

    # ---- phase 2 (last step only): necks + predictor head + loss ----
    @pl.when(i == two_n - 1)
    def _():
        vp = v_ref[...]                                          # (16, 128) f32 vectors
        row = lax.broadcasted_iota(jnp.int32, (two_n, 1), 0)
        is_v1 = row < n                                          # rows [0,n) = view 1
        inv_n = jnp.float32(1.0 / n)

        def bn_relu(h, gamma, beta):
            # BatchNorm1d (train mode, biased var, two-pass) with per-view batch stats,
            # matching the two separate forward calls in PyTorch, fused with ReLU.
            h1, h2 = h[:n], h[n:]
            m1 = jnp.sum(h1, axis=0, keepdims=True) * inv_n
            m2 = jnp.sum(h2, axis=0, keepdims=True) * inv_n
            var1 = jnp.sum((h1 - m1) ** 2, axis=0, keepdims=True) * inv_n
            var2 = jnp.sum((h2 - m2) ** 2, axis=0, keepdims=True) * inv_n
            s1 = gamma * lax.rsqrt(var1 + _BN_EPS)
            s2 = gamma * lax.rsqrt(var2 + _BN_EPS)
            scale = jnp.where(is_v1, s1, s2)
            shift = jnp.where(is_v1, beta - m1 * s1, beta - m2 * s2)
            return jnp.maximum(h * scale + shift, 0.0)

        feats = feat_ref[...].astype(jnp.bfloat16)               # (2N, 128)

        # Online|target projector necks, block-fused into lane-dense 128-wide matmuls.
        h = jnp.dot(feats, w_ref[1], preferred_element_type=jnp.float32) + vp[1:2]
        hn = bn_relu(h, vp[2:3], vp[3:4])
        proj = jnp.dot(hn.astype(jnp.bfloat16), w_ref[2],
                       preferred_element_type=jnp.float32) + vp[4:5]
        # proj cols [0,d) = target projection, cols [d,2d) = online projection.

        # Predictor head on the online projection (padded weight selects its columns).
        g = jnp.dot(proj.astype(jnp.bfloat16), w_ref[3],
                    preferred_element_type=jnp.float32) + vp[5:6]
        gn = bn_relu(g, vp[6:7], vp[7:8])
        pred = jnp.dot(gn.astype(jnp.bfloat16), w_ref[4],
                       preferred_element_type=jnp.float32) + vp[8:9]   # cols [0,d)

        # LatentPredictHead loss summed over both (pred_v1,tgt_v2)+(pred_v2,tgt_v1):
        #   loss = -2/N * sum_i cos(pred_i, proj_target of the OTHER view of image i)
        col = lax.broadcasted_iota(jnp.int32, (1, LANE), 1)
        t = proj * (col < d).astype(jnp.float32)                 # isolate proj_target
        pred_n = pred * lax.rsqrt(
            jnp.maximum(jnp.sum(pred * pred, axis=1, keepdims=True), _EPS2))
        t_n = t * lax.rsqrt(
            jnp.maximum(jnp.sum(t * t, axis=1, keepdims=True), _EPS2))
        t_pair = pltpu.roll(t_n, shift=n, axis=0)                # pair view1 <-> view2 rows
        cos = jnp.sum(pred_n * t_pair, axis=1, keepdims=True)    # (2N, 1)
        total = jnp.sum(cos, axis=0, keepdims=True)              # (1, 1)
        loss_ref[...] = jnp.broadcast_to((-2.0 / n) * total, (1, LANE))


def byol_train_step(patches, wpack, vpack, *, n, hw, d):
    two_n = 2 * n
    kernel = functools.partial(_byol_train_kernel, n=n, hw=hw, d=d)
    grid_spec = pltpu.PrefetchScalarGridSpec(
        num_scalar_prefetch=0,
        grid=(two_n,),
        in_specs=[
            pl.BlockSpec((hw, LANE), lambda i: (i, 0)),            # one image's patches / step
            pl.BlockSpec((5, LANE, LANE), lambda i: (0, 0, 0)),    # packed bf16 weights (resident)
            pl.BlockSpec((16, LANE), lambda i: (0, 0)),            # packed f32 vectors (resident)
        ],
        out_specs=pl.BlockSpec((1, LANE), lambda i: (0, 0)),       # lane-dense loss row
        scratch_shapes=[pltpu.VMEM((two_n, LANE), jnp.float32)],   # pooled features carry
    )
    loss_row = pl.pallas_call(
        kernel,
        out_shape=jax.ShapeDtypeStruct((1, LANE), jnp.float32),
        grid_spec=grid_spec,
        compiler_params=pltpu.CompilerParams(
            dimension_semantics=("arbitrary",)),   # carried scratch + last-step epilogue
    )(patches, wpack, vpack)
    return loss_row[0, 0]


# ----------------------------- JAX glue -----------------------------

def im2col(x_nchw, k=3):
    """(B, C, H, W) -> (B*H*W, C*k*k), SAME padding, stride 1 (rows image-major)."""
    patches = lax.conv_general_dilated_patches(
        x_nchw, filter_shape=(k, k), window_strides=(1, 1), padding='SAME')
    b, ck, h, w = patches.shape
    return jnp.transpose(patches, (0, 2, 3, 1)).reshape(b * h * w, ck)


def _pack_params(online, target, head, ck):
    """Pack the ~22 tiny parameter tensors into one bf16 weight pack (5,128,128) and
    one f32 vector pack (16,128) so the kernel needs only 3 input DMAs."""
    cf = online['conv_w'].shape[1]
    hid = online['neck_w1'].shape[1]
    d = online['neck_w2'].shape[1]
    assert ck <= LANE and 2 * cf <= LANE and 2 * hid <= LANE and 2 * d <= LANE

    w = jnp.zeros((5, LANE, LANE), jnp.bfloat16)
    # [0] conv: shared patches -> online channels [0,cf), target channels [cf,2cf)
    w = w.at[0, :ck, 0:cf].set(online['conv_w'])
    w = w.at[0, :ck, cf:2 * cf].set(target['conv_w'])
    # [1] neck linear-1 (block diagonal): online feat -> cols [0,hid), target -> [hid,2hid)
    w = w.at[1, 0:cf, 0:hid].set(online['neck_w1'])
    w = w.at[1, cf:2 * cf, hid:2 * hid].set(target['neck_w1'])
    # [2] neck linear-2: online hid -> proj_o cols [d,2d), target hid -> proj_t cols [0,d)
    w = w.at[2, 0:hid, d:2 * d].set(online['neck_w2'])
    w = w.at[2, hid:2 * hid, 0:d].set(target['neck_w2'])
    # [3] predictor linear-1: reads only the proj_o columns [d,2d)
    w = w.at[3, d:2 * d, 0:hid].set(head['w1'])
    # [4] predictor linear-2: pred -> cols [0,d)
    w = w.at[4, 0:hid, 0:d].set(head['w2'])

    v = jnp.zeros((16, LANE), jnp.float32)
    v = v.at[0, 0:cf].set(online['conv_b'].reshape(-1))
    v = v.at[0, cf:2 * cf].set(target['conv_b'].reshape(-1))
    v = v.at[1, 0:hid].set(online['neck_b1'].reshape(-1))
    v = v.at[1, hid:2 * hid].set(target['neck_b1'].reshape(-1))
    v = v.at[2, 0:hid].set(online['neck_g'].reshape(-1))
    v = v.at[2, hid:2 * hid].set(target['neck_g'].reshape(-1))
    v = v.at[3, 0:hid].set(online['neck_beta'].reshape(-1))
    v = v.at[3, hid:2 * hid].set(target['neck_beta'].reshape(-1))
    v = v.at[4, d:2 * d].set(online['neck_b2'].reshape(-1))
    v = v.at[4, 0:d].set(target['neck_b2'].reshape(-1))
    v = v.at[5, 0:hid].set(head['b1'].reshape(-1))
    v = v.at[6, 0:hid].set(head['g'].reshape(-1))
    v = v.at[7, 0:hid].set(head['beta'].reshape(-1))
    v = v.at[8, 0:d].set(head['b2'].reshape(-1))
    return w, v, d


def byol_forward_train(img, online, target, head):
    """BYOL.forward_train: img is (N, 2, C, H, W); returns dict(loss=scalar)."""
    assert img.ndim == 5, 'Input must have 5 dims, got: {}'.format(img.ndim)
    n = img.shape[0]
    hw = img.shape[3] * img.shape[4]
    # BYOL: no gradients into the target network (forward value unchanged).
    target = jax.lax.stop_gradient(target)
    # Batch both augmented views -> one shared im2col for online AND target nets.
    imgs = jnp.concatenate([img[:, 0], img[:, 1]], axis=0)       # (2N, C, H, W)
    patches = im2col(imgs)                                       # (2N*HW, CK) f32
    ck = patches.shape[1]
    assert ck <= LANE
    patches = jnp.pad(patches, ((0, 0), (0, LANE - ck))).astype(jnp.bfloat16)
    wpack, vpack, d = _pack_params(online, target, head, ck)
    loss = byol_train_step(patches, wpack, vpack, n=n, hw=hw, d=d)
    return dict(loss=loss)

# TODO(synk): _momentum_update (EMA of the target params), BatchNorm running_mean/var
# buffer tracking, and dist.all_reduce inside BaseModel._parse_losses are training-time
# buffer/collective updates with no forward-pass Pallas equivalent.


# ----------------------------- Param init -----------------------------

def init_online_params(key, c_in=4, k=3, c_feat=32, hid=64, d=32):
    ks = jax.random.split(key, 3)
    ck = c_in * k * k
    return {
        'conv_w':    (0.1 * jax.random.normal(ks[0], (ck, c_feat), jnp.float32)).astype(jnp.bfloat16),
        'conv_b':    jnp.zeros((1, c_feat), jnp.float32),
        'neck_w1':   (0.1 * jax.random.normal(ks[1], (c_feat, hid), jnp.float32)).astype(jnp.bfloat16),
        'neck_b1':   jnp.zeros((1, hid), jnp.float32),
        'neck_g':    jnp.ones((1, hid), jnp.float32),
        'neck_beta': jnp.zeros((1, hid), jnp.float32),
        'neck_w2':   (0.1 * jax.random.normal(ks[2], (hid, d), jnp.float32)).astype(jnp.bfloat16),
        'neck_b2':   jnp.zeros((1, d), jnp.float32),
    }


def init_head_params(key, d=32, hid=64):
    ks = jax.random.split(key, 2)
    return {
        'w1':   (0.1 * jax.random.normal(ks[0], (d, hid), jnp.float32)).astype(jnp.bfloat16),
        'b1':   jnp.zeros((1, hid), jnp.float32),
        'g':    jnp.ones((1, hid), jnp.float32),
        'beta': jnp.zeros((1, hid), jnp.float32),
        'w2':   (0.1 * jax.random.normal(ks[1], (hid, d), jnp.float32)).astype(jnp.bfloat16),
        'b2':   jnp.zeros((1, d), jnp.float32),
    }


# ----------------------------- Main -----------------------------

if __name__ == "__main__":
    key = jax.random.PRNGKey(0)
    k_img, k_net, k_head = jax.random.split(key, 3)

    N, C, H, W = 4, 4, 16, 16
    img = jax.random.normal(k_img, (N, 2, C, H, W), jnp.float32)

    online_params = init_online_params(k_net)
    # target net initialized as a (deep) copy of the online net (BYOL.init_weights)
    target_params = jax.tree_util.tree_map(jnp.copy, online_params)
    head_params = init_head_params(k_head)

    fwd = jax.jit(byol_forward_train)
    out = fwd(img, online_params, target_params, head_params)
    loss = jax.block_until_ready(out['loss'])
    assert loss.shape == () and jnp.isfinite(loss)
    print("KERNEL_OK")
</pallas_src>

<mosaic_0001>
module attributes {stable_mosaic.version = 11 : i64} {
  func.func @_byol_train_kernel(%arg0: i32, %arg1: memref<256x128xbf16, #tpu.memory_space<vmem>>, %arg2: memref<5x128x128xbf16, #tpu.memory_space<vmem>>, %arg3: memref<16x128xf32, #tpu.memory_space<vmem>>, %arg4: memref<1x128xf32, #tpu.memory_space<vmem>>, %arg5: memref<8x128xf32, #tpu.memory_space<vmem>>) attributes {dimension_semantics = [#tpu.dimension_semantics<arbitrary>], iteration_bounds = array<i64: 8>, scalar_prefetch = 0 : i64, scratch_operands = 1 : i64, tpu.core_type = #tpu.core_type<tc>, window_params = [{transform_indices = @transform_0, window_bounds = array<i64: 256, 128>}, {pipeline_mode = #tpu.pipeline_mode<synchronous>, transform_indices = @transform_1, window_bounds = array<i64: 5, 128, 128>}, {pipeline_mode = #tpu.pipeline_mode<synchronous>, transform_indices = @transform_2, window_bounds = array<i64: 16, 128>}, {pipeline_mode = #tpu.pipeline_mode<synchronous>, transform_indices = @transform_3, window_bounds = array<i64: 1, 128>}]} {
    %c0 = arith.constant 0 : index
    %c0_0 = arith.constant 0 : index
    %0 = vector.load %arg1[%c0, %c0_0] : memref<256x128xbf16, #tpu.memory_space<vmem>>, vector<256x128xbf16>
    %c0_1 = arith.constant 0 : index
    %c0_2 = arith.constant 0 : index
    %c0_3 = arith.constant 0 : index
    %1 = vector.load %arg2[%c0_1, %c0_2, %c0_3] : memref<5x128x128xbf16, #tpu.memory_space<vmem>>, vector<1x128x128xbf16>
    %2 = vector.shape_cast %1 : vector<1x128x128xbf16> to vector<128x128xbf16>
    %cst = arith.constant dense<0.000000e+00> : vector<256x128xf32>
    %3 = tpu.matmul %0, %2, %cst {dimension_numbers = #tpu.dot_dimension_numbers<[1], [0], [0], [1], [0, 0, 1, 1], [], []>} : vector<256x128xbf16>, vector<128x128xbf16>, vector<256x128xf32> -> vector<256x128xf32>
    %c0_4 = arith.constant 0 : index
    %c0_5 = arith.constant 0 : index
    %4 = vector.load %arg3[%c0_4, %c0_5] : memref<16x128xf32, #tpu.memory_space<vmem>>, vector<1x128xf32>
    %5 = vector.broadcast %4 : vector<1x128xf32> to vector<256x128xf32>
    %6 = arith.addf %3, %5 : vector<256x128xf32>
    %cst_6 = arith.constant 0.000000e+00 : f32
    %7 = vector.broadcast %cst_6 : f32 to vector<256x128xf32>
    %8 = arith.maximumf %6, %7 : vector<256x128xf32>
    %cst_7 = arith.constant dense<0.000000e+00> : vector<128xf32>
    %9 = vector.multi_reduction <add>, %8, %cst_7 [0] : vector<256x128xf32> to vector<128xf32>
    %10 = vector.shape_cast %9 : vector<128xf32> to vector<1x128xf32>
    %cst_8 = arith.constant 3.906250e-03 : f32
    %11 = vector.broadcast %cst_8 : f32 to vector<1x128xf32>
    %12 = arith.mulf %10, %11 : vector<1x128xf32>
    %13 = arith.index_cast %arg0 : i32 to index
    %c0_9 = arith.constant 0 : index
    %14 = vector.load %arg5[%13, %c0_9] : memref<8x128xf32, #tpu.memory_space<vmem>>, vector<1x128xf32>
    tpu.vector_store %arg5[%13, %c0_9], %12 {strides = array<i32>} : memref<8x128xf32, #tpu.memory_space<vmem>>, vector<1x128xf32>,
    %c7_i32 = arith.constant 7 : i32
    %15 = arith.cmpi eq, %arg0, %c7_i32 : i32
    %16 = arith.extui %15 : i1 to i32
    %c0_i32 = arith.constant 0 : i32
    %17 = arith.cmpi ne, %16, %c0_i32 : i32
    scf.if %17 {
      %c0_10 = arith.constant 0 : index
      %c0_11 = arith.constant 0 : index
      %18 = vector.load %arg3[%c0_10, %c0_11] : memref<16x128xf32, #tpu.memory_space<vmem>>, vector<16x128xf32>
      %19 = tpu.iota {dimensions = array<i32: 0>} : vector<8x1xi32>
      %c4_i32 = arith.constant 4 : i32
      %20 = vector.broadcast %c4_i32 : i32 to vector<8x1xi32>
      %21 = arith.cmpi slt, %19, %20 : vector<8x1xi32>
      %c0_12 = arith.constant 0 : index
      %c0_13 = arith.constant 0 : index
      %22 = vector.load %arg5[%c0_12, %c0_13] : memref<8x128xf32, #tpu.memory_space<vmem>>, vector<8x128xf32>
      %23 = arith.truncf %22 : vector<8x128xf32> to vector<8x128xbf16>
      %c1 = arith.constant 1 : index
      %c0_14 = arith.constant 0 : index
      %c0_15 = arith.constant 0 : index
      %24 = vector.load %arg2[%c1, %c0_14, %c0_15] : memref<5x128x128xbf16, #tpu.memory_space<vmem>>, vector<1x128x128xbf16>
      %25 = vector.shape_cast %24 : vector<1x128x128xbf16> to vector<128x128xbf16>
      %cst_16 = arith.constant dense<0.000000e+00> : vector<8x128xf32>
      %26 = tpu.matmul %23, %25, %cst_16 {dimension_numbers = #tpu.dot_dimension_numbers<[1], [0], [0], [1], [0, 0, 1, 1], [], []>} : vector<8x128xbf16>, vector<128x128xbf16>, vector<8x128xf32> -> vector<8x128xf32>
      %27 = vector.extract_strided_slice %18 {offsets = [1, 0], sizes = [1, 128], strides = [1, 1]} : vector<16x128xf32> to vector<1x128xf32>
      %28 = vector.broadcast %27 : vector<1x128xf32> to vector<8x128xf32>
      %29 = arith.addf %26, %28 : vector<8x128xf32>
      %30 = vector.extract_strided_slice %18 {offsets = [2, 0], sizes = [1, 128], strides = [1, 1]} : vector<16x128xf32> to vector<1x128xf32>
      %31 = vector.extract_strided_slice %18 {offsets = [3, 0], sizes = [1, 128], strides = [1, 1]} : vector<16x128xf32> to vector<1x128xf32>
      %32 = vector.extract_strided_slice %29 {offsets = [0, 0], sizes = [4, 128], strides = [1, 1]} : vector<8x128xf32> to vector<4x128xf32>
      %33 = vector.extract_strided_slice %29 {offsets = [4, 0], sizes = [4, 128], strides = [1, 1]} : vector<8x128xf32> to vector<4x128xf32>
      %cst_17 = arith.constant dense<0.000000e+00> : vector<128xf32>
      %34 = vector.multi_reduction <add>, %32, %cst_17 [0] : vector<4x128xf32> to vector<128xf32>
      %35 = vector.shape_cast %34 : vector<128xf32> to vector<1x128xf32>
      %cst_18 = arith.constant 2.500000e-01 : f32
      %36 = vector.broadcast %cst_18 : f32 to vector<1x128xf32>
      %37 = arith.mulf %35, %36 : vector<1x128xf32>
      %cst_19 = arith.constant dense<0.000000e+00> : vector<128xf32>
      %38 = vector.multi_reduction <add>, %33, %cst_19 [0] : vector<4x128xf32> to vector<128xf32>
      %39 = vector.shape_cast %38 : vector<128xf32> to vector<1x128xf32>
      %cst_20 = arith.constant 2.500000e-01 : f32
      %40 = vector.broadcast %cst_20 : f32 to vector<1x128xf32>
      %41 = arith.mulf %39, %40 : vector<1x128xf32>
      %42 = vector.broadcast %37 : vector<1x128xf32> to vector<4x128xf32>
      %43 = arith.subf %32, %42 : vector<4x128xf32>
      %44 = arith.mulf %43, %43 : vector<4x128xf32>
      %cst_21 = arith.constant dense<0.000000e+00> : vector<128xf32>
      %45 = vector.multi_reduction <add>, %44, %cst_21 [0] : vector<4x128xf32> to vector<128xf32>
      %46 = vector.shape_cast %45 : vector<128xf32> to vector<1x128xf32>
      %cst_22 = arith.constant 2.500000e-01 : f32
      %47 = vector.broadcast %cst_22 : f32 to vector<1x128xf32>
      %48 = arith.mulf %46, %47 : vector<1x128xf32>
      %49 = vector.broadcast %41 : vector<1x128xf32> to vector<4x128xf32>
      %50 = arith.subf %33, %49 : vector<4x128xf32>
      %51 = arith.mulf %50, %50 : vector<4x128xf32>
      %cst_23 = arith.constant dense<0.000000e+00> : vector<128xf32>
      %52 = vector.multi_reduction <add>, %51, %cst_23 [0] : vector<4x128xf32> to vector<128xf32>
      %53 = vector.shape_cast %52 : vector<128xf32> to vector<1x128xf32>
      %cst_24 = arith.constant 2.500000e-01 : f32
      %54 = vector.broadcast %cst_24 : f32 to vector<1x128xf32>
      %55 = arith.mulf %53, %54 : vector<1x128xf32>
      %cst_25 = arith.constant 9.99999974E-6 : f32
      %56 = vector.broadcast %cst_25 : f32 to vector<1x128xf32>
      %57 = arith.addf %48, %56 : vector<1x128xf32>
      %58 = math.rsqrt %57 : vector<1x128xf32>
      %59 = arith.mulf %30, %58 : vector<1x128xf32>
      %cst_26 = arith.constant 9.99999974E-6 : f32
      %60 = vector.broadcast %cst_26 : f32 to vector<1x128xf32>
      %61 = arith.addf %55, %60 : vector<1x128xf32>
      %62 = math.rsqrt %61 : vector<1x128xf32>
      %63 = arith.mulf %30, %62 : vector<1x128xf32>
      %64 = vector.shape_cast %21 : vector<8x1xi1> to vector<8x1xi1>
      %65 = vector.broadcast %64 : vector<8x1xi1> to vector<8x128xi1>
      %66 = vector.shape_cast %59 : vector<1x128xf32> to vector<1x128xf32>
      %67 = vector.broadcast %66 : vector<1x128xf32> to vector<8x128xf32>
      %68 = vector.shape_cast %63 : vector<1x128xf32> to vector<1x128xf32>
      %69 = vector.broadcast %68 : vector<1x128xf32> to vector<8x128xf32>
      %70 = arith.select %65, %67, %69 : vector<8x128xi1>, vector<8x128xf32>
      %71 = arith.mulf %37, %59 : vector<1x128xf32>
      %72 = arith.subf %31, %71 : vector<1x128xf32>
      %73 = arith.mulf %41, %63 : vector<1x128xf32>
      %74 = arith.subf %31, %73 : vector<1x128xf32>
      %75 = vector.shape_cast %21 : vector<8x1xi1> to vector<8x1xi1>
      %76 = vector.broadcast %75 : vector<8x1xi1> to vector<8x128xi1>
      %77 = vector.shape_cast %72 : vector<1x128xf32> to vector<1x128xf32>
      %78 = vector.broadcast %77 : vector<1x128xf32> to vector<8x128xf32>
      %79 = vector.shape_cast %74 : vector<1x128xf32> to vector<1x128xf32>
      %80 = vector.broadcast %79 : vector<1x128xf32> to vector<8x128xf32>
      %81 = arith.select %76, %78, %80 : vector<8x128xi1>, vector<8x128xf32>
      %82 = arith.mulf %29, %70 : vector<8x128xf32>
      %83 = arith.addf %82, %81 : vector<8x128xf32>
      %cst_27 = arith.constant 0.000000e+00 : f32
      %84 = vector.broadcast %cst_27 : f32 to vector<8x128xf32>
      %85 = arith.maximumf %83, %84 : vector<8x128xf32>
      %86 = arith.truncf %85 : vector<8x128xf32> to vector<8x128xbf16>
      %c2 = arith.constant 2 : index
      %c0_28 = arith.constant 0 : index
      %c0_29 = arith.constant 0 : index
      %87 = vector.load %arg2[%c2, %c0_28, %c0_29] : memref<5x128x128xbf16, #tpu.memory_space<vmem>>, vector<1x128x128xbf16>
      %88 = vector.shape_cast %87 : vector<1x128x128xbf16> to vector<128x128xbf16>
      %cst_30 = arith.constant dense<0.000000e+00> : vector<8x128xf32>
      %89 = tpu.matmul %86, %88, %cst_30 {dimension_numbers = #tpu.dot_dimension_numbers<[1], [0], [0], [1], [0, 0, 1, 1], [], []>} : vector<8x128xbf16>, vector<128x128xbf16>, vector<8x128xf32> -> vector<8x128xf32>
      %90 = vector.extract_strided_slice %18 {offsets = [4, 0], sizes = [1, 128], strides = [1, 1]} : vector<16x128xf32> to vector<1x128xf32>
      %91 = vector.broadcast %90 : vector<1x128xf32> to vector<8x128xf32>
      %92 = arith.addf %89, %91 : vector<8x128xf32>
      %93 = arith.truncf %92 : vector<8x128xf32> to vector<8x128xbf16>
      %c3 = arith.constant 3 : index
      %c0_31 = arith.constant 0 : index
      %c0_32 = arith.constant 0 : index
      %94 = vector.load %arg2[%c3, %c0_31, %c0_32] : memref<5x128x128xbf16, #tpu.memory_space<vmem>>, vector<1x128x128xbf16>
      %95 = vector.shape_cast %94 : vector<1x128x128xbf16> to vector<128x128xbf16>
      %cst_33 = arith.constant dense<0.000000e+00> : vector<8x128xf32>
      %96 = tpu.matmul %93, %95, %cst_33 {dimension_numbers = #tpu.dot_dimension_numbers<[1], [0], [0], [1], [0, 0, 1, 1], [], []>} : vector<8x128xbf16>, vector<128x128xbf16>, vector<8x128xf32> -> vector<8x128xf32>
      %97 = vector.extract_strided_slice %18 {offsets = [5, 0], sizes = [1, 128], strides = [1, 1]} : vector<16x128xf32> to vector<1x128xf32>
      %98 = vector.broadcast %97 : vector<1x128xf32> to vector<8x128xf32>
      %99 = arith.addf %96, %98 : vector<8x128xf32>
      %100 = vector.extract_strided_slice %18 {offsets = [6, 0], sizes = [1, 128], strides = [1, 1]} : vector<16x128xf32> to vector<1x128xf32>
      %101 = vector.extract_strided_slice %18 {offsets = [7, 0], sizes = [1, 128], strides = [1, 1]} : vector<16x128xf32> to vector<1x128xf32>
      %102 = vector.extract_strided_slice %99 {offsets = [0, 0], sizes = [4, 128], strides = [1, 1]} : vector<8x128xf32> to vector<4x128xf32>
      %103 = vector.extract_strided_slice %99 {offsets = [4, 0], sizes = [4, 128], strides = [1, 1]} : vector<8x128xf32> to vector<4x128xf32>
      %cst_34 = arith.constant dense<0.000000e+00> : vector<128xf32>
      %104 = vector.multi_reduction <add>, %102, %cst_34 [0] : vector<4x128xf32> to vector<128xf32>
      %105 = vector.shape_cast %104 : vector<128xf32> to vector<1x128xf32>
      %cst_35 = arith.constant 2.500000e-01 : f32
      %106 = vector.broadcast %cst_35 : f32 to vector<1x128xf32>
      %107 = arith.mulf %105, %106 : vector<1x128xf32>
      %cst_36 = arith.constant dense<0.000000e+00> : vector<128xf32>
      %108 = vector.multi_reduction <add>, %103, %cst_36 [0] : vector<4x128xf32> to vector<128xf32>
      %109 = vector.shape_cast %108 : vector<128xf32> to vector<1x128xf32>
      %cst_37 = arith.constant 2.500000e-01 : f32
      %110 = vector.broadcast %cst_37 : f32 to vector<1x128xf32>
      %111 = arith.mulf %109, %110 : vector<1x128xf32>
      %112 = vector.broadcast %107 : vector<1x128xf32> to vector<4x128xf32>
      %113 = arith.subf %102, %112 : vector<4x128xf32>
      %114 = arith.mulf %113, %113 : vector<4x128xf32>
      %cst_38 = arith.constant dense<0.000000e+00> : vector<128xf32>
      %115 = vector.multi_reduction <add>, %114, %cst_38 [0] : vector<4x128xf32> to vector<128xf32>
      %116 = vector.shape_cast %115 : vector<128xf32> to vector<1x128xf32>
      %cst_39 = arith.constant 2.500000e-01 : f32
      %117 = vector.broadcast %cst_39 : f32 to vector<1x128xf32>
      %118 = arith.mulf %116, %117 : vector<1x128xf32>
      %119 = vector.broadcast %111 : vector<1x128xf32> to vector<4x128xf32>
      %120 = arith.subf %103, %119 : vector<4x128xf32>
      %121 = arith.mulf %120, %120 : vector<4x128xf32>
      %cst_40 = arith.constant dense<0.000000e+00> : vector<128xf32>
      %122 = vector.multi_reduction <add>, %121, %cst_40 [0] : vector<4x128xf32> to vector<128xf32>
      %123 = vector.shape_cast %122 : vector<128xf32> to vector<1x128xf32>
      %cst_41 = arith.constant 2.500000e-01 : f32
      %124 = vector.broadcast %cst_41 : f32 to vector<1x128xf32>
      %125 = arith.mulf %123, %124 : vector<1x128xf32>
      %cst_42 = arith.constant 9.99999974E-6 : f32
      %126 = vector.broadcast %cst_42 : f32 to vector<1x128xf32>
      %127 = arith.addf %118, %126 : vector<1x128xf32>
      %128 = math.rsqrt %127 : vector<1x128xf32>
      %129 = arith.mulf %100, %128 : vector<1x128xf32>
      %cst_43 = arith.constant 9.99999974E-6 : f32
      %130 = vector.broadcast %cst_43 : f32 to vector<1x128xf32>
      %131 = arith.addf %125, %130 : vector<1x128xf32>
      %132 = math.rsqrt %131 : vector<1x128xf32>
      %133 = arith.mulf %100, %132 : vector<1x128xf32>
      %134 = vector.shape_cast %21 : vector<8x1xi1> to vector<8x1xi1>
      %135 = vector.broadcast %134 : vector<8x1xi1> to vector<8x128xi1>
      %136 = vector.shape_cast %129 : vector<1x128xf32> to vector<1x128xf32>
      %137 = vector.broadcast %136 : vector<1x128xf32> to vector<8x128xf32>
      %138 = vector.shape_cast %133 : vector<1x128xf32> to vector<1x128xf32>
      %139 = vector.broadcast %138 : vector<1x128xf32> to vector<8x128xf32>
      %140 = arith.select %135, %137, %139 : vector<8x128xi1>, vector<8x128xf32>
      %141 = arith.mulf %107, %129 : vector<1x128xf32>
      %142 = arith.subf %101, %141 : vector<1x128xf32>
      %143 = arith.mulf %111, %133 : vector<1x128xf32>
      %144 = arith.subf %101, %143 : vector<1x128xf32>
      %145 = vector.shape_cast %21 : vector<8x1xi1> to vector<8x1xi1>
      %146 = vector.broadcast %145 : vector<8x1xi1> to vector<8x128xi1>
      %147 = vector.shape_cast %142 : vector<1x128xf32> to vector<1x128xf32>
      %148 = vector.broadcast %147 : vector<1x128xf32> to vector<8x128xf32>
      %149 = vector.shape_cast %144 : vector<1x128xf32> to vector<1x128xf32>
      %150 = vector.broadcast %149 : vector<1x128xf32> to vector<8x128xf32>
      %151 = arith.select %146, %148, %150 : vector<8x128xi1>, vector<8x128xf32>
      %152 = arith.mulf %99, %140 : vector<8x128xf32>
      %153 = arith.addf %152, %151 : vector<8x128xf32>
      %cst_44 = arith.constant 0.000000e+00 : f32
      %154 = vector.broadcast %cst_44 : f32 to vector<8x128xf32>
      %155 = arith.maximumf %153, %154 : vector<8x128xf32>
      %156 = arith.truncf %155 : vector<8x128xf32> to vector<8x128xbf16>
      %c4 = arith.constant 4 : index
      %c0_45 = arith.constant 0 : index
      %c0_46 = arith.constant 0 : index
      %157 = vector.load %arg2[%c4, %c0_45, %c0_46] : memref<5x128x128xbf16, #tpu.memory_space<vmem>>, vector<1x128x128xbf16>
      %158 = vector.shape_cast %157 : vector<1x128x128xbf16> to vector<128x128xbf16>
      %cst_47 = arith.constant dense<0.000000e+00> : vector<8x128xf32>
      %159 = tpu.matmul %156, %158, %cst_47 {dimension_numbers = #tpu.dot_dimension_numbers<[1], [0], [0], [1], [0, 0, 1, 1], [], []>} : vector<8x128xbf16>, vector<128x128xbf16>, vector<8x128xf32> -> vector<8x128xf32>
      %160 = vector.extract_strided_slice %18 {offsets = [8, 0], sizes = [1, 128], strides = [1, 1]} : vector<16x128xf32> to vector<1x128xf32>
      %161 = vector.broadcast %160 : vector<1x128xf32> to vector<8x128xf32>
      %162 = arith.addf %159, %161 : vector<8x128xf32>
      %163 = tpu.iota {dimensions = array<i32: 1>} : vector<1x128xi32>
      %c32_i32 = arith.constant 32 : i32
      %164 = vector.broadcast %c32_i32 : i32 to vector<1x128xi32>
      %165 = arith.cmpi slt, %163, %164 : vector<1x128xi32>
      %166 = arith.extui %165 : vector<1x128xi1> to vector<1x128xi32>
      %167 = arith.sitofp %166 : vector<1x128xi32> to vector<1x128xf32>
      %168 = vector.broadcast %167 : vector<1x128xf32> to vector<8x128xf32>
      %169 = arith.mulf %92, %168 : vector<8x128xf32>
      %170 = arith.mulf %162, %162 : vector<8x128xf32>
      %cst_48 = arith.constant dense<0.000000e+00> : vector<8xf32>
      %171 = vector.multi_reduction <add>, %170, %cst_48 [1] : vector<8x128xf32> to vector<8xf32>
      %172 = vector.shape_cast %171 : vector<8xf32> to vector<8x1xf32>
      %cst_49 = arith.constant 1.000000e-24 : f32
      %173 = vector.broadcast %cst_49 : f32 to vector<8x1xf32>
      %174 = arith.maximumf %172, %173 : vector<8x1xf32>
      %175 = math.rsqrt %174 : vector<8x1xf32>
      %176 = vector.broadcast %175 : vector<8x1xf32> to vector<8x128xf32>
      %177 = arith.mulf %162, %176 : vector<8x128xf32>
      %178 = arith.mulf %169, %169 : vector<8x128xf32>
      %cst_50 = arith.constant dense<0.000000e+00> : vector<8xf32>
      %179 = vector.multi_reduction <add>, %178, %cst_50 [1] : vector<8x128xf32> to vector<8xf32>
      %180 = vector.shape_cast %179 : vector<8xf32> to vector<8x1xf32>
      %cst_51 = arith.constant 1.000000e-24 : f32
      %181 = vector.broadcast %cst_51 : f32 to vector<8x1xf32>
      %182 = arith.maximumf %180, %181 : vector<8x1xf32>
      %183 = math.rsqrt %182 : vector<8x1xf32>
      %184 = vector.broadcast %183 : vector<8x1xf32> to vector<8x128xf32>
      %185 = arith.mulf %169, %184 : vector<8x128xf32>
      %c4_i32_52 = arith.constant 4 : i32
      %186 = tpu.dynamic_rotate %185 by %c4_i32_52 dim 0 : vector<8x128xf32>, i32 -> vector<8x128xf32>
      %187 = arith.mulf %177, %186 : vector<8x128xf32>
      %cst_53 = arith.constant dense<0.000000e+00> : vector<8xf32>
      %188 = vector.multi_reduction <add>, %187, %cst_53 [1] : vector<8x128xf32> to vector<8xf32>
      %189 = vector.shape_cast %188 : vector<8xf32> to vector<8x1xf32>
      %cst_54 = arith.constant dense<0.000000e+00> : vector<1xf32>
      %190 = vector.multi_reduction <add>, %189, %cst_54 [0] : vector<8x1xf32> to vector<1xf32>
      %191 = vector.shape_cast %190 : vector<1xf32> to vector<1x1xf32>
      %cst_55 = arith.constant -5.000000e-01 : f32
      %192 = vector.broadcast %cst_55 : f32 to vector<1x1xf32>
      %193 = arith.mulf %192, %191 : vector<1x1xf32>
      %194 = vector.shape_cast %193 : vector<1x1xf32> to vector<1x1xf32>
      %195 = vector.broadcast %194 : vector<1x1xf32> to vector<1x128xf32>
      %c0_56 = arith.constant 0 : index
      %c0_57 = arith.constant 0 : index
      %196 = vector.load %arg4[%c0_56, %c0_57] : memref<1x128xf32, #tpu.memory_space<vmem>>, vector<1x128xf32>
      tpu.vector_store %arg4[%c0_56, %c0_57], %195 {strides = array<i32>} : memref<1x128xf32, #tpu.memory_space<vmem>>, vector<1x128xf32>,
    } else {
    }
    return
  }
  func.func @transform_0(%arg0: i32) -> (i32, i32) {
    %c0_i32 = arith.constant 0 : i32
    %c0_i32_0 = arith.constant 0 : i32
    return %arg0, %c0_i32 : i32, i32
  }
  func.func @transform_1(%arg0: i32) -> (i32, i32, i32) {
    %c0_i32 = arith.constant 0 : i32
    %c0_i32_0 = arith.constant 0 : i32
    %c0_i32_1 = arith.constant 0 : i32
    %c0_i32_2 = arith.constant 0 : i32
    return %c0_i32, %c0_i32_0, %c0_i32_1 : i32, i32, i32
  }
  func.func @transform_2(%arg0: i32) -> (i32, i32) {
    %c0_i32 = arith.constant 0 : i32
    %c0_i32_0 = arith.constant 0 : i32
    %c0_i32_1 = arith.constant 0 : i32
    return %c0_i32, %c0_i32_0 : i32, i32
  }
  func.func @transform_3(%arg0: i32) -> (i32, i32) {
    %c0_i32 = arith.constant 0 : i32
    %c0_i32_0 = arith.constant 0 : i32
    %c0_i32_1 = arith.constant 0 : i32
    return %c0_i32, %c0_i32_0 : i32, i32
  }
}

</mosaic_0001>

<llo_original>
// kernel: byol_forward_train.1
$region0: #{byol_forward_train.1}
  #allocation0 [shape = 'u32[]', space=smem, size = 0x4, offset = 0x4, fixed_abs, tag = 'smem constant byte address 0x4 - core index']
  #allocation1 [shape = 'u32[144,128]{1,0:T(1,128)}', space=vmem, size = 0x12000, scoped, tag = 'internal scratch']
  #allocation2 [shape = 'f32[8,128]{1,0:T(8,128)}', space=vmem, size = 0x1000, scoped, tag = 'scratch operand']
  %s0 = inlined_call_operand.vmem [shape: bf16[2048,128], index: 0, kind: input, shape index: {}]
  %s1 = inlined_call_operand.vmem [shape: bf16[5,128,128], index: 1, kind: input, shape index: {}]
  %s2 = inlined_call_operand.vmem [shape: f32[16,128], index: 2, kind: input, shape index: {}]
  %s3 = inlined_call_operand.hbm [shape: f32[1,128], index: 3, kind: output, shape index: {}]
  %s4 = sld [smem:[#allocation0]]
  $region49: #{byol_forward_train.1} parent=0
    _
  %s6 = ssub.s32 1, %s4
  %s7 = scalar_select 0, %s6, %s4
  $region1: #{byol_forward_train.1} parent=0
    #allocation3 [shape = 'u8[512]{0}', space=vmem, size = 0x400, scoped, tag = 'output window, operand 0, single buffered']
    #allocation4 [shape = 's32[2]{0}', space=sflag, size = 0x8, scoped, tag = 'scoped memory for byol_forward_train.1']
    %8 = vsyncpa [#allocation4], 0
    loop: start=0, step=1, limit=10
    $region2: #{byol_forward_train.1} parent=1 // loop_pre_header
      _
    $region3: #{byol_forward_train.1} parent=1 // loop_header
      %s10 = sphi 0, %s14
      %p11 = scmp.ge.s32.totalorder %s10, 10
      %s20 = sphi 0, %s22
      %s23 = sphi 0, %s20
      %s24 = sphi 0, %s23
      %s40 = sphi 0, %s24
      %s44 = sphi 0, %s44
      %s46 = sphi 0, %s44
      %s47 = sphi 0, %s46
      %s61 = sphi 0, %s47
      %s65 = sphi 0, %s65
      %s67 = sphi 0, %s65
      %s68 = sphi 0, %s67
      %s82 = sphi 0, %s68
      %s86 = sphi 0, %s86
      %s88 = sphi 0, %s86
      %s89 = sphi 0, %s88
      %s103 = sphi 0, %s89
    $region4: #{byol_forward_train.1} parent=1 // loop_header_branch
      %13 = sbr.rel (%p11) target = $region8
    $region5: #{byol_forward_train.1} parent=1 // loop_body
      %s15 = ssub.s32 %s10, 1
      %s16 = ssub.s32 %s10, 2
      %s17 = sadd.s32 %s10, 1
      %s18 = ssub.s32 %s10, %s17
      %p19 = scmp.eq.s32.totalorder %s18, 0
      %s21 = sadd.s32 %s20, 1
      %s22 = scalar_select %p19, %s20, %s21
      %p25 = pneg %p19
      %p26 = scmp.eq.s32.totalorder %s10, 7
      %p27 = por %p25, %p26
      %p28 = scmp.ne.s32.totalorder %s20, %s23
      %p29 = scmp.eq.s32.totalorder %s10, 0
      %p30 = por %p28, %p29
      %p31 = scmp.ne.s32.totalorder %s20, %s23
      %p32 = scmp.eq.s32.totalorder %s15, 7
      %p33 = por %p31, %p32
      %p34 = scmp.ne.s32.totalorder %s23, %s24
      %p35 = scmp.eq.s32.totalorder %s15, 0
      %p36 = por %p34, %p35
      %p37 = scmp.ne.s32.totalorder %s23, %s24
      %p38 = scmp.eq.s32.totalorder %s16, 7
      %p39 = por %p37, %p38
      %p41 = scmp.ne.s32.totalorder %s24, %s40
      %p42 = scmp.eq.s32.totalorder %s16, 0
      %p43 = por %p41, %p42
      %s45 = sadd.s32 %s44, 1
      %p48 = scmp.eq.s32.totalorder %s10, 7
      %p49 = scmp.ne.s32.totalorder %s44, %s46
      %p50 = scmp.eq.s32.totalorder %s10, 0
      %p51 = por %p49, %p50
      %p52 = scmp.ne.s32.totalorder %s44, %s46
      %p53 = scmp.eq.s32.totalorder %s15, 7
      %p54 = por %p52, %p53
      %p55 = scmp.ne.s32.totalorder %s46, %s47
      %p56 = scmp.eq.s32.totalorder %s15, 0
      %p57 = por %p55, %p56
      %p58 = scmp.ne.s32.totalorder %s46, %s47
      %p59 = scmp.eq.s32.totalorder %s16, 7
      %p60 = por %p58, %p59
      %p62 = scmp.ne.s32.totalorder %s47, %s61
      %p63 = scmp.eq.s32.totalorder %s16, 0
      %p64 = por %p62, %p63
      %s66 = sadd.s32 %s65, 1
      %p69 = scmp.eq.s32.totalorder %s10, 7
      %p70 = scmp.ne.s32.totalorder %s65, %s67
      %p71 = scmp.eq.s32.totalorder %s10, 0
      %p72 = por %p70, %p71
      %p73 = scmp.ne.s32.totalorder %s65, %s67
      %p74 = scmp.eq.s32.totalorder %s15, 7
      %p75 = por %p73, %p74
      %p76 = scmp.ne.s32.totalorder %s67, %s68
      %p77 = scmp.eq.s32.totalorder %s15, 0
      %p78 = por %p76, %p77
      %p79 = scmp.ne.s32.totalorder %s67, %s68
      %p80 = scmp.eq.s32.totalorder %s16, 7
      %p81 = por %p79, %p80
      %p83 = scmp.ne.s32.totalorder %s68, %s82
      %p84 = scmp.eq.s32.totalorder %s16, 0
      %p85 = por %p83, %p84
      %s87 = sadd.s32 %s86, 1
      %p90 = scmp.eq.s32.totalorder %s10, 7
      %p91 = scmp.ne.s32.totalorder %s86, %s88
      %p92 = scmp.eq.s32.totalorder %s10, 0
      %p93 = por %p91, %p92
      %p94 = scmp.ne.s32.totalorder %s86, %s88
      %p95 = scmp.eq.s32.totalorder %s15, 7
      %p96 = por %p94, %p95
      %p97 = scmp.ne.s32.totalorder %s88, %s89
      %p98 = scmp.eq.s32.totalorder %s15, 0
      %p99 = por %p97, %p98
      %p100 = scmp.ne.s32.totalorder %s88, %s89
      %p101 = scmp.eq.s32.totalorder %s16, 7
      %p102 = por %p100, %p101
      %p104 = scmp.ne.s32.totalorder %s89, %s103
      %p105 = scmp.eq.s32.totalorder %s16, 0
      %p106 = por %p104, %p105
      %p107 = scmp.le.s32.totalorder 1, %s10
      %p108 = scmp.lt.s32.totalorder %s10, 9
      %p109 = pnand %p107, %p108
      %p110 = pneg %p109
      // Predicated region
      $region9: #{byol_forward_train.1} parent=5 // pred_check
        _
      $region10: #{byol_forward_train.1} parent=5 // pred_check_branch
        %112 = sbr.rel (%p109) target = $region12
      $region11: #{byol_forward_train.1} parent=5 // pred_region
        %s113 = ssub.s32 %s10, 1
        // Predicated region
        $region13: #{byol_forward_train.1} parent=11 // pred_check
          %p114 = pneg %p57
        $region14: #{byol_forward_train.1} parent=11 // pred_check_branch
          %116 = sbr.rel (%p114) target = $region16
        $region15: #{byol_forward_train.1} parent=11 // pred_region
          _
        $region16: #{byol_forward_train.1} parent=11 // pred_fallthru
          _
        // Predicated region
        $region17: #{byol_forward_train.1} parent=11 // pred_check
          %p117 = pneg %p78
        $region18: #{byol_forward_train.1} parent=11 // pred_check_branch
          %119 = sbr.rel (%p117) target = $region20
        $region19: #{byol_forward_train.1} parent=11 // pred_region
          _
        $region20: #{byol_forward_train.1} parent=11 // pred_fallthru
          _
      $region12: #{byol_forward_train.1} parent=5 // pred_fallthru
        _
      %p120 = scmp.lt.s32.totalorder %s10, 8
      // Predicated region
      $region21: #{byol_forward_train.1} parent=5 // pred_check
        %p121 = pneg %p120
      $region22: #{byol_forward_train.1} parent=5 // pred_check_branch
        %123 = sbr.rel (%p121) target = $region24
      $region23: #{byol_forward_train.1} parent=5 // pred_region
        // Predicated region
        $region25: #{byol_forward_train.1} parent=23 // pred_check
          %p124 = pneg %p30
        $region26: #{byol_forward_train.1} parent=23 // pred_check_branch
          %126 = sbr.rel (%p124) target = $region28
        $region27: #{byol_forward_train.1} parent=23 // pred_region
          %s127 = smul.u32 32, %s10
          %p128 = scmp.lt.s32.totalorder %s127, 255
          %s129 = scalar_select %p128, %s127, 255
          %s130 = smul.addr %s129, 4
          %s131 = scalar_lea.vmem %s0, %s130
          %s132 = smul.u32 32, %s10
        $region28: #{byol_forward_train.1} parent=23 // pred_fallthru
          _
      $region24: #{byol_forward_train.1} parent=5 // pred_fallthru
        _
      %p133 = scmp.le.s32.totalorder 1, %s10
      %p134 = scmp.lt.s32.totalorder %s10, 9
      %p135 = pnand %p133, %p134
      %p136 = pneg %p135
      // Predicated region
      $region29: #{byol_forward_train.1} parent=5 // pred_check
        _
      $region30: #{byol_forward_train.1} parent=5 // pred_check_branch
        %138 = sbr.rel (%p135) target = $region32
      $region31: #{byol_forward_train.1} parent=5 // pred_region
        %s139 = ssub.s32 %s10, 1
        %s140 = smul.u32 32, %s15
        %p141 = scmp.lt.s32.totalorder %s140, 255
        %s142 = scalar_select %p141, %s140, 255
        %s143 = smul.addr %s142, 4
        %s144 = scalar_lea.vmem %s0, %s143
        %p145 = pneg %p36
        %p146 = pneg %p33
        %p147 = pneg %p57
        %p148 = pneg %p54
        %p149 = pneg %p78
        %p150 = pneg %p75
        %p151 = pneg %p99
        %p152 = pneg %p96
        %s153 = smul.u32 32, %s15
        %p154 = scmp.lt.s32.totalorder %s153, 255
        %s155 = scalar_select %p154, %s153, 255
        %s156 = smul.addr %s155, 4
        %s157 = scalar_lea.vmem %s0, %s156
        %s158 = smul.u32 32, %s15
        %v160 = vld [vmem:[%s157] sm:$0xf]
        %v161 = vld [vmem:[%s157 + $0x4] sm:$0xf]
        %v162 = vld [vmem:[%s157 + $0x8] sm:$0xf]
        %v163 = vld [vmem:[%s157 + $0xc] sm:$0xf]
        %v164 = vld [vmem:[%s157 + $0x10] sm:$0xf]
        %v165 = vld [vmem:[%s157 + $0x14] sm:$0xf]
        %v166 = vld [vmem:[%s157 + $0x18] sm:$0xf]
        %v167 = vld [vmem:[%s157 + $0x1c] sm:$0xf]
        %v168 = vld [vmem:[%s157 + $0x20] sm:$0xf]
        %v169 = vld [vmem:[%s157 + $0x24] sm:$0xf]
        %v170 = vld [vmem:[%s157 + $0x28] sm:$0xf]
        %v171 = vld [vmem:[%s157 + $0x2c] sm:$0xf]
        %v172 = vld [vmem:[%s157 + $0x30] sm:$0xf]
        %v173 = vld [vmem:[%s157 + $0x34] sm:$0xf]
        %v174 = vld [vmem:[%s157 + $0x38] sm:$0xf]
        %v175 = vld [vmem:[%s157 + $0x3c] sm:$0xf]
        %v176 = vld [vmem:[%s157 + $0x40] sm:$0xf]
        %v177 = vld [vmem:[%s157 + $0x44] sm:$0xf]
        %v178 = vld [vmem:[%s157 + $0x48] sm:$0xf]
        %v179 = vld [vmem:[%s157 + $0x4c] sm:$0xf]
        %v180 = vld [vmem:[%s157 + $0x50] sm:$0xf]
        %v181 = vld [vmem:[%s157 + $0x54] sm:$0xf]
        %v182 = vld [vmem:[%s157 + $0x58] sm:$0xf]
        %v183 = vld [vmem:[%s157 + $0x5c] sm:$0xf]
        %v184 = vld [vmem:[%s157 + $0x60] sm:$0xf]
        %v185 = vld [vmem:[%s157 + $0x64] sm:$0xf]
        %v186 = vld [vmem:[%s157 + $0x68] sm:$0xf]
        %v187 = vld [vmem:[%s157 + $0x6c] sm:$0xf]
        %v188 = vld [vmem:[%s157 + $0x70] sm:$0xf]
        %v189 = vld [vmem:[%s157 + $0x74] sm:$0xf]
        %v190 = vld [vmem:[%s157 + $0x78] sm:$0xf]
        %v191 = vld [vmem:[%s157 + $0x7c] sm:$0xf]
        %v192 = vld [vmem:[%s1] sm:$0xf]
        %v193 = vld [vmem:[%s1 + $0x4] sm:$0xf]
        %v194 = vld [vmem:[%s1 + $0x8] sm:$0xf]
        %v195 = vld [vmem:[%s1 + $0xc] sm:$0xf]
        %v196 = vld [vmem:[%s1 + $0x10] sm:$0xf]
        %v197 = vld [vmem:[%s1 + $0x14] sm:$0xf]
        %v198 = vld [vmem:[%s1 + $0x18] sm:$0xf]
        %v199 = vld [vmem:[%s1 + $0x1c] sm:$0xf]
        %v200 = vld [vmem:[%s1 + $0x20] sm:$0xf]
        %v201 = vld [vmem:[%s1 + $0x24] sm:$0xf]
        %v202 = vld [vmem:[%s1 + $0x28] sm:$0xf]
        %v203 = vld [vmem:[%s1 + $0x2c] sm:$0xf]
        %v204 = vld [vmem:[%s1 + $0x30] sm:$0xf]
        %v205 = vld [vmem:[%s1 + $0x34] sm:$0xf]
        %v206 = vld [vmem:[%s1 + $0x38] sm:$0xf]
        %v207 = vld [vmem:[%s1 + $0x3c] sm:$0xf]
        %v208 = vld [vmem:[%s2] sm:$0x1]
        %v209 = vlaneseq
        %v210 = vshrl.u32 %v209, 7
        %v211 = vsub.s32 0, %v210
        %v212 = vrot.slane %v208, %v211
        %v245 = vunpack.c.l.b16 %v160
        %v246 = vunpack.c.l.b16 %v161
        %v247 = vunpack.c.l.b16 %v162
        %v248 = vunpack.c.l.b16 %v163
        %v249 = vunpack.c.l.b16 %v164
        %v250 = vunpack.c.l.b16 %v165
        %v251 = vunpack.c.l.b16 %v166
        %v252 = vunpack.c.l.b16 %v167
        %v253 = vunpack.c.l.b16 %v168
        %v254 = vunpack.c.l.b16 %v169
        %v255 = vunpack.c.l.b16 %v170
        %v256 = vunpack.c.l.b16 %v171
        %v257 = vunpack.c.l.b16 %v172
        %v258 = vunpack.c.l.b16 %v173
        %v259 = vunpack.c.l.b16 %v174
        %v260 = vunpack.c.l.b16 %v175
        %v261 = vunpack.c.l.b16 %v176
        %v262 = vunpack.c.l.b16 %v177
        %v263 = vunpack.c.l.b16 %v178
        %v264 = vunpack.c.l.b16 %v179
        %v265 = vunpack.c.l.b16 %v180
        %v266 = vunpack.c.l.b16 %v181
        %v267 = vunpack.c.l.b16 %v182
        %v268 = vunpack.c.l.b16 %v183
        %v269 = vunpack.c.l.b16 %v184
        %v270 = vunpack.c.l.b16 %v185
        %v271 = vunpack.c.l.b16 %v186
        %v272 = vunpack.c.l.b16 %v187
        %v273 = vunpack.c.l.b16 %v188
        %v274 = vunpack.c.l.b16 %v189
        %v275 = vunpack.c.l.b16 %v190
        %v276 = vunpack.c.l.b16 %v191
        %v277 = vpack.c.b16 %v246, %v245
        %v278 = vpack.c.b16 %v248, %v247
        %v279 = vpack.c.b16 %v250, %v249
        %v280 = vpack.c.b16 %v252, %v251
        %v281 = vpack.c.b16 %v254, %v253
        %v282 = vpack.c.b16 %v256, %v255
        %v283 = vpack.c.b16 %v258, %v257
        %v284 = vpack.c.b16 %v260, %v259
        %v285 = vpack.c.b16 %v262, %v261
        %v286 = vpack.c.b16 %v264, %v263
        %v287 = vpack.c.b16 %v266, %v265
        %v288 = vpack.c.b16 %v268, %v267
        %v289 = vpack.c.b16 %v270, %v269
        %v290 = vpack.c.b16 %v272, %v271
        %v291 = vpack.c.b16 %v274, %v273
        %v292 = vpack.c.b16 %v276, %v275
        %v325 = vunpack.c.l.b16 %v192
        %v326 = vunpack.c.l.b16 %v193
        %v327 = vunpack.c.l.b16 %v194
        %v328 = vunpack.c.l.b16 %v195
        %v329 = vunpack.c.l.b16 %v196
        %v330 = vunpack.c.l.b16 %v197
        %v331 = vunpack.c.l.b16 %v198
        %v332 = vunpack.c.l.b16 %v199
        %v333 = vunpack.c.l.b16 %v200
        %v334 = vunpack.c.l.b16 %v201
        %v335 = vunpack.c.l.b16 %v202
        %v336 = vunpack.c.l.b16 %v203
        %v337 = vunpack.c.l.b16 %v204
        %v338 = vunpack.c.l.b16 %v205
        %v339 = vunpack.c.l.b16 %v206
        %v340 = vunpack.c.l.b16 %v207
        %v341 = vpack.c.b16 %v326, %v325
        %v342 = vpack.c.b16 %v328, %v327
        %v343 = vpack.c.b16 %v330, %v329
        %v344 = vpack.c.b16 %v332, %v331
        %v345 = vpack.c.b16 %v334, %v333
        %v346 = vpack.c.b16 %v336, %v335
        %v347 = vpack.c.b16 %v338, %v337
        %v348 = vpack.c.b16 %v340, %v339
        %357 = vmatprep.subr.bf16.mxu0 0
        %358 = vmatpush1.bf16.msra.mxu0 %v348
        %359 = vmatprep.subr.bf16.mxu0 0
        %360 = vmatpush1.bf16.msra.mxu0 %v347
        %361 = vmatprep.subr.bf16.mxu0 0
        %362 = vmatpush1.bf16.msra.mxu0 %v346
        %363 = vmatprep.subr.bf16.mxu0 0
        %364 = vmatpush1.bf16.msra.mxu0 %v345
        %365 = vmatprep.subr.bf16.mxu0 0
        %366 = vmatpush1.bf16.msra.mxu0 %v344
        %367 = vmatprep.subr.bf16.mxu0 0
        %368 = vmatpush1.bf16.msra.mxu0 %v343
        %369 = vmatprep.subr.bf16.mxu0 0
        %370 = vmatpush1.bf16.msra.mxu0 %v342
        %371 = vmatprep.subr.bf16.mxu0 0
        %372 = vmatpush1.bf16.msra.mxu0 %v341
        %373 = vmatprep.subr.bf16.mxu0 0
        %374 = vmatpush2.bf16.msra.mxu0 0
        %375 = vmatprep.subr.bf16.mxu0 0
        %376 = vmatpush2.bf16.msra.mxu0 0
        %377 = vmatprep.subr.bf16.mxu0 0
        %378 = vmatpush2.bf16.msra.mxu0 0
        %379 = vmatprep.subr.bf16.mxu0 0
        %380 = vmatpush2.bf16.msra.mxu0 0
        %381 = vmatprep.subr.bf16.mxu0 0
        %382 = vmatpush2.bf16.msra.mxu0 0
        %383 = vmatprep.subr.bf16.mxu0 0
        %384 = vmatpush2.bf16.msra.mxu0 0
        %385 = vmatprep.subr.bf16.mxu0 0
        %386 = vmatpush2.bf16.msra.mxu0 0
        %387 = vmatprep.subr.bf16.mxu0 0
        %388 = vmatpush2.bf16.msra.mxu0 0
        %389 = vmatprep.mubr.bf16.mxu0 0
        %390 = vmatmul.mubr.bf16.gmra.mxu0 %v277
        %v391 = vpop.f32.mrf.mxu0
        %v392 = vadd.f32 %v212, %v391
        %v393 = vpop.f32.mrf.mxu0
        %v394 = vpop.f32.mrf.mxu0
        %v395 = vadd.f32 %v212, %v394
        %v396 = vpop.f32.mrf.mxu0
        %397 = vmatprep.mubr.bf16.mxu0 0
        %398 = vmatmul.mubr.bf16.gmra.mxu0 %v278
        %v399 = vpop.f32.mrf.mxu0
        %v400 = vadd.f32 %v212, %v399
        %v401 = vpop.f32.mrf.mxu0
        %v402 = vpop.f32.mrf.mxu0
        %v403 = vadd.f32 %v212, %v402
        %v404 = vpop.f32.mrf.mxu0
        %405 = vmatprep.mubr.bf16.mxu0 0
        %406 = vmatmul.mubr.bf16.gmra.mxu0 %v279
        %v407 = vpop.f32.mrf.mxu0
        %v408 = vadd.f32 %v212, %v407
        %v409 = vpop.f32.mrf.mxu0
        %v410 = vpop.f32.mrf.mxu0
        %v411 = vadd.f32 %v212, %v410
        %v412 = vpop.f32.mrf.mxu0
        %413 = vmatprep.mubr.bf16.mxu0 0
        %414 = vmatmul.mubr.bf16.gmra.mxu0 %v280
        %v415 = vpop.f32.mrf.mxu0
        %v416 = vadd.f32 %v212, %v415
        %v417 = vpop.f32.mrf.mxu0
        %v418 = vpop.f32.mrf.mxu0
        %v419 = vadd.f32 %v212, %v418
        %v420 = vpop.f32.mrf.mxu0
        %421 = vmatprep.mubr.bf16.mxu0 0
        %422 = vmatmul.mubr.bf16.gmra.mxu0 %v281
        %v423 = vpop.f32.mrf.mxu0
        %v424 = vadd.f32 %v212, %v423
        %v425 = vpop.f32.mrf.mxu0
        %v426 = vpop.f32.mrf.mxu0
        %v427 = vadd.f32 %v212, %v426
        %v428 = vpop.f32.mrf.mxu0
        %429 = vmatprep.mubr.bf16.mxu0 0
        %430 = vmatmul.mubr.bf16.gmra.mxu0 %v282
        %v431 = vpop.f32.mrf.mxu0
        %v432 = vadd.f32 %v212, %v431
        %v433 = vpop.f32.mrf.mxu0
        %v434 = vpop.f32.mrf.mxu0
        %v435 = vadd.f32 %v212, %v434
        %v436 = vpop.f32.mrf.mxu0
        %437 = vmatprep.mubr.bf16.mxu0 0
        %438 = vmatmul.mubr.bf16.gmra.mxu0 %v283
        %v439 = vpop.f32.mrf.mxu0
        %v440 = vadd.f32 %v212, %v439
        %v441 = vpop.f32.mrf.mxu0
        %v442 = vpop.f32.mrf.mxu0
        %v443 = vadd.f32 %v212, %v442
        %v444 = vpop.f32.mrf.mxu0
        %445 = vmatprep.mubr.bf16.mxu0 0
        %446 = vmatmul.mubr.bf16.gmra.mxu0 %v284
        %v447 = vpop.f32.mrf.mxu0
        %v448 = vadd.f32 %v212, %v447
        %v449 = vpop.f32.mrf.mxu0
        %v450 = vpop.f32.mrf.mxu0
        %v451 = vadd.f32 %v212, %v450
        %v452 = vpop.f32.mrf.mxu0
        %453 = vmatprep.mubr.bf16.mxu0 0
        %454 = vmatmul.mubr.bf16.gmra.mxu0 %v285
        %v455 = vpop.f32.mrf.mxu0
        %v456 = vadd.f32 %v212, %v455
        %v457 = vpop.f32.mrf.mxu0
        %v458 = vpop.f32.mrf.mxu0
        %v459 = vadd.f32 %v212, %v458
        %v460 = vpop.f32.mrf.mxu0
        %461 = vmatprep.mubr.bf16.mxu0 0
        %462 = vmatmul.mubr.bf16.gmra.mxu0 %v286
        %v463 = vpop.f32.mrf.mxu0
        %v464 = vadd.f32 %v212, %v463
        %v465 = vpop.f32.mrf.mxu0
        %v466 = vpop.f32.mrf.mxu0
        %v467 = vadd.f32 %v212, %v466
        %v468 = vpop.f32.mrf.mxu0
        %469 = vmatprep.mubr.bf16.mxu0 0
        %470 = vmatmul.mubr.bf16.gmra.mxu0 %v287
        %v471 = vpop.f32.mrf.mxu0
        %v472 = vadd.f32 %v212, %v471
        %v473 = vpop.f32.mrf.mxu0
        %v474 = vpop.f32.mrf.mxu0
        %v475 = vadd.f32 %v212, %v474
        %v476 = vpop.f32.mrf.mxu0
        %477 = vmatprep.mubr.bf16.mxu0 0
        %478 = vmatmul.mubr.bf16.gmra.mxu0 %v288
        %v479 = vpop.f32.mrf.mxu0
        %v480 = vadd.f32 %v212, %v479
        %v481 = vpop.f32.mrf.mxu0
        %v482 = vpop.f32.mrf.mxu0
        %v483 = vadd.f32 %v212, %v482
        %v484 = vpop.f32.mrf.mxu0
        %485 = vmatprep.mubr.bf16.mxu0 0
        %486 = vmatmul.mubr.bf16.gmra.mxu0 %v289
        %v487 = vpop.f32.mrf.mxu0
        %v488 = vadd.f32 %v212, %v487
        %v489 = vpop.f32.mrf.mxu0
        %v490 = vpop.f32.mrf.mxu0
        %v491 = vadd.f32 %v212, %v490
        %v492 = vpop.f32.mrf.mxu0
        %493 = vmatprep.mubr.bf16.mxu0 0
        %494 = vmatmul.mubr.bf16.gmra.mxu0 %v290
        %v495 = vpop.f32.mrf.mxu0
        %v496 = vadd.f32 %v212, %v495
        %v497 = vpop.f32.mrf.mxu0
        %v498 = vpop.f32.mrf.mxu0
        %v499 = vadd.f32 %v212, %v498
        %v500 = vpop.f32.mrf.mxu0
        %501 = vmatprep.mubr.bf16.mxu0 0
        %502 = vmatmul.mubr.bf16.gmra.mxu0 %v291
        %v503 = vpop.f32.mrf.mxu0
        %v504 = vadd.f32 %v212, %v503
        %v505 = vpop.f32.mrf.mxu0
        %v506 = vpop.f32.mrf.mxu0
        %v507 = vadd.f32 %v212, %v506
        %v508 = vpop.f32.mrf.mxu0
        %509 = vmatprep.mubr.bf16.mxu0 0
        %510 = vmatmul.mubr.bf16.gmra.mxu0 %v292
        %v511 = vpop.f32.mrf.mxu0
        %v512 = vadd.f32 %v212, %v511
        %v513 = vpop.f32.mrf.mxu0
        %v514 = vpop.f32.mrf.mxu0
        %v515 = vadd.f32 %v212, %v514
        %v516 = vpop.f32.mrf.mxu0
        %517 = vdwg.mxu0
        %v518 = vmax.f32 %v392, 0.0
        %v519 = vmax.f32 %v395, 0.0
        %v520 = vmax.f32 %v400, 0.0
        %v521 = vmax.f32 %v403, 0.0
        %v522 = vmax.f32 %v408, 0.0
        %v523 = vmax.f32 %v411, 0.0
        %v524 = vmax.f32 %v416, 0.0
        %v525 = vmax.f32 %v419, 0.0
        %v526 = vmax.f32 %v424, 0.0
        %v527 = vmax.f32 %v427, 0.0
        %v528 = vmax.f32 %v432, 0.0
        %v529 = vmax.f32 %v435, 0.0
        %v530 = vmax.f32 %v440, 0.0
        %v531 = vmax.f32 %v443, 0.0
        %v532 = vmax.f32 %v448, 0.0
        %v533 = vmax.f32 %v451, 0.0
        %v534 = vmax.f32 %v456, 0.0
        %v535 = vmax.f32 %v459, 0.0
        %v536 = vmax.f32 %v464, 0.0
        %v537 = vmax.f32 %v467, 0.0
        %v538 = vmax.f32 %v472, 0.0
        %v539 = vmax.f32 %v475, 0.0
        %v540 = vmax.f32 %v480, 0.0
        %v541 = vmax.f32 %v483, 0.0
        %v542 = vmax.f32 %v488, 0.0
        %v543 = vmax.f32 %v491, 0.0
        %v544 = vmax.f32 %v496, 0.0
        %v545 = vmax.f32 %v499, 0.0
        %v546 = vmax.f32 %v504, 0.0
        %v547 = vmax.f32 %v507, 0.0
        %v548 = vmax.f32 %v512, 0.0
        %v549 = vmax.f32 %v515, 0.0
        %v550 = vadd.f32 %v518, %v519
        %v551 = vadd.f32 %v550, %v520
        %v552 = vadd.f32 %v551, %v521
        %v553 = vadd.f32 %v552, %v522
        %v554 = vadd.f32 %v553, %v523
        %v555 = vadd.f32 %v554, %v524
        %v556 = vadd.f32 %v555, %v525
        %v557 = vadd.f32 %v556, %v526
        %v558 = vadd.f32 %v557, %v527
        %v559 = vadd.f32 %v558, %v528
        %v560 = vadd.f32 %v559, %v529
        %v561 = vadd.f32 %v560, %v530
        %v562 = vadd.f32 %v561, %v531
        %v563 = vadd.f32 %v562, %v532
        %v564 = vadd.f32 %v563, %v533
        %v565 = vadd.f32 %v564, %v534
        %v566 = vadd.f32 %v565, %v535
        %v567 = vadd.f32 %v566, %v536
        %v568 = vadd.f32 %v567, %v537
        %v569 = vadd.f32 %v568, %v538
        %v570 = vadd.f32 %v569, %v539
        %v571 = vadd.f32 %v570, %v540
        %v572 = vadd.f32 %v571, %v541
        %v573 = vadd.f32 %v572, %v542
        %v574 = vadd.f32 %v573, %v543
        %v575 = vadd.f32 %v574, %v544
        %v576 = vadd.f32 %v575, %v545
        %v577 = vadd.f32 %v576, %v546
        %v578 = vadd.f32 %v577, %v547
        %v579 = vadd.f32 %v578, %v548
        %v580 = vadd.f32 %v579, %v549
        %v581 = vrot.slane %v580, 4
        %v582 = vadd.f32 %v580, %v581
        %v583 = vrot.slane %v582, 2
        %v584 = vadd.f32 %v582, %v583
        %v585 = vrot.slane %v584, 1
        %v586 = vadd.f32 %v584, %v585
        %v587 = vmul.f32 %v586, 0.00390625
        %s588 = scalar_lea.vmem [#allocation2], %s15
        %589 = vst [vmem:[%s588] sm:$0x1] %v587
        %p590 = scmp.eq.s32.totalorder %s15, 7
        // Predicated region
        $region33: #{byol_forward_train.1} parent=31 // pred_check
          %p591 = pneg %p590
        $region34: #{byol_forward_train.1} parent=31 // pred_check_branch
          %593 = sbr.rel (%p591) target = $region36
        $region35: #{byol_forward_train.1} parent=31 // pred_region
          %v594 = vld [vmem:[%s2] sm:$0xff]
          %v595 = vld [vmem:[%s2 + $0x8] sm:$0xff]
          %v596 = vlaneseq
          %v597 = vshrl.u32 %v596, 7
          %vm598 = vcmp.lt.s32.totalorder %v597, 4
          %v599 = vld [vmem:[#allocation2] sm:$0xff]
          %v600 = vpack.c.bf16 %v599, %v599
          %s601 = scalar_lea.vmem %s1, 64
          %v602 = vld [vmem:[%s601] sm:$0xf]
          %v603 = vld [vmem:[%s601 + $0x4] sm:$0xf]
          %v604 = vld [vmem:[%s601 + $0x8] sm:$0xf]
          %v605 = vld [vmem:[%s601 + $0xc] sm:$0xf]
          %v606 = vld [vmem:[%s601 + $0x10] sm:$0xf]
          %v607 = vld [vmem:[%s601 + $0x14] sm:$0xf]
          %v608 = vld [vmem:[%s601 + $0x18] sm:$0xf]
          %v609 = vld [vmem:[%s601 + $0x1c] sm:$0xf]
          %v610 = vld [vmem:[%s601 + $0x20] sm:$0xf]
          %v611 = vld [vmem:[%s601 + $0x24] sm:$0xf]
          %v612 = vld [vmem:[%s601 + $0x28] sm:$0xf]
          %v613 = vld [vmem:[%s601 + $0x2c] sm:$0xf]
          %v614 = vld [vmem:[%s601 + $0x30] sm:$0xf]
          %v615 = vld [vmem:[%s601 + $0x34] sm:$0xf]
          %v616 = vld [vmem:[%s601 + $0x38] sm:$0xf]
          %v617 = vld [vmem:[%s601 + $0x3c] sm:$0xf]
          %v618 = vlaneseq
          %v619 = vshrl.u32 %v618, 7
          %v620 = vsub.s32 1, %v619
          %v621 = vrot.slane %v594, %v620
          %v638 = vunpack.c.l.b16 %v602
          %v639 = vunpack.c.l.b16 %v603
          %v640 = vunpack.c.l.b16 %v604
          %v641 = vunpack.c.l.b16 %v605
          %v642 = vunpack.c.l.b16 %v606
          %v643 = vunpack.c.l.b16 %v607
          %v644 = vunpack.c.l.b16 %v608
          %v645 = vunpack.c.l.b16 %v609
          %v646 = vunpack.c.l.b16 %v610
          %v647 = vunpack.c.l.b16 %v611
          %v648 = vunpack.c.l.b16 %v612
          %v649 = vunpack.c.l.b16 %v613
          %v650 = vunpack.c.l.b16 %v614
          %v651 = vunpack.c.l.b16 %v615
          %v652 = vunpack.c.l.b16 %v616
          %v653 = vunpack.c.l.b16 %v617
          %v654 = vpack.c.b16 %v639, %v638
          %v655 = vpack.c.b16 %v641, %v640
          %v656 = vpack.c.b16 %v643, %v642
          %v657 = vpack.c.b16 %v645, %v644
          %v658 = vpack.c.b16 %v647, %v646
          %v659 = vpack.c.b16 %v649, %v648
          %v660 = vpack.c.b16 %v651, %v650
          %v661 = vpack.c.b16 %v653, %v652
          %670 = vmatprep.subr.bf16.mxu0 0
          %671 = vmatpush1.bf16.msra.mxu0 %v661
          %672 = vmatprep.subr.bf16.mxu0 0
          %673 = vmatpush1.bf16.msra.mxu0 %v660
          %674 = vmatprep.subr.bf16.mxu0 0
          %675 = vmatpush1.bf16.msra.mxu0 %v659
          %676 = vmatprep.subr.bf16.mxu0 0
          %677 = vmatpush1.bf16.msra.mxu0 %v658
          %678 = vmatprep.subr.bf16.mxu0 0
          %679 = vmatpush1.bf16.msra.mxu0 %v657
          %680 = vmatprep.subr.bf16.mxu0 0
          %681 = vmatpush1.bf16.msra.mxu0 %v656
          %682 = vmatprep.subr.bf16.mxu0 0
          %683 = vmatpush1.bf16.msra.mxu0 %v655
          %684 = vmatprep.subr.bf16.mxu0 0
          %685 = vmatpush1.bf16.msra.mxu0 %v654
          %686 = vmatprep.subr.bf16.mxu0 0
          %687 = vmatpush2.bf16.msra.mxu0 0
          %688 = vmatprep.subr.bf16.mxu0 0
          %689 = vmatpush2.bf16.msra.mxu0 0
          %690 = vmatprep.subr.bf16.mxu0 0
          %691 = vmatpush2.bf16.msra.mxu0 0
          %692 = vmatprep.subr.bf16.mxu0 0
          %693 = vmatpush2.bf16.msra.mxu0 0
          %694 = vmatprep.subr.bf16.mxu0 0
          %695 = vmatpush2.bf16.msra.mxu0 0
          %696 = vmatprep.subr.bf16.mxu0 0
          %697 = vmatpush2.bf16.msra.mxu0 0
          %698 = vmatprep.subr.bf16.mxu0 0
          %699 = vmatpush2.bf16.msra.mxu0 0
          %700 = vmatprep.subr.bf16.mxu0 0
          %701 = vmatpush2.bf16.msra.mxu0 0
          %702 = vmatprep.mubr.bf16.mxu0 0
          %703 = vmatmul.mubr.bf16.gmra.mxu0 %v600
          %v704 = vpop.f32.mrf.mxu0
          %v705 = vadd.f32 %v621, %v704
          %v706 = vpop.f32.mrf.mxu0
          %v707 = vpop.f32.mrf.mxu0
          %v708 = vpop.f32.mrf.mxu0
          %709 = vdwg.mxu0
          %vm710 = vcmask 1043456
          %v711 = vsel %vm710, %v705, 0.0
          %v712 = vrot.slane %v711, 4
          %v713 = vadd.f32 %v711, %v712
          %v714 = vrot.slane %v713, 2
          %v715 = vadd.f32 %v713, %v714
          %v716 = vrot.slane %v715, 1
          %v717 = vadd.f32 %v715, %v716
          %v718 = vmul.f32 %v717, 0.25
          %v720 = vrot.slane %v705, 4
          %v722 = vsel %vm710, %v720, 0.0
          %v723 = vrot.slane %v722, 4
          %v724 = vadd.f32 %v722, %v723
          %v725 = vrot.slane %v724, 2
          %v726 = vadd.f32 %v724, %v725
          %v727 = vrot.slane %v726, 1
          %v728 = vadd.f32 %v726, %v727
          %v729 = vmul.f32 %v728, 0.25
          %v730 = vsub.f32 %v705, %v718
          %v731 = vmul.f32 %v730, %v730
          %v732 = vsel %vm710, %v731, 0.0
          %v733 = vrot.slane %v732, 4
          %v734 = vadd.f32 %v732, %v733
          %v735 = vrot.slane %v734, 2
          %v736 = vadd.f32 %v734, %v735
          %v737 = vrot.slane %v736, 1
          %v738 = vadd.f32 %v736, %v737
          %v739 = vmul.f32 %v738, 0.25
          %v740 = vsub.f32 %v705, %v729
          %v741 = vmul.f32 %v740, %v740
          %v743 = vrot.slane %v741, 4
          %v745 = vsel %vm710, %v743, 0.0
          %v746 = vrot.slane %v745, 4
          %v747 = vadd.f32 %v745, %v746
          %v748 = vrot.slane %v747, 2
          %v749 = vadd.f32 %v747, %v748
          %v750 = vrot.slane %v749, 1
          %v751 = vadd.f32 %v749, %v750
          %v752 = vmul.f32 %v751, 0.25
          %v753 = vadd.f32 %v739, 1e-05
          %v754 = vrsqrt.pop %v753
          %v755 = vmul.f32 %v594, %v754
          %v756 = vadd.f32 %v752, 1e-05
          %v757 = vrsqrt.pop %v756
          %v758 = vmul.f32 %v594, %v757
          %v759 = vsel %vm598, 1, 0
          %vm760 = vcmp.eq.s32.totalorder %v759, 1
          %v761 = vlaneseq
          %v762 = vshrl.u32 %v761, 7
          %v763 = vsub.s32 2, %v762
          %v764 = vrot.slane %v755, %v763
          %v765 = vlaneseq
          %v766 = vshrl.u32 %v765, 7
          %v767 = vsub.s32 2, %v766
          %v768 = vrot.slane %v758, %v767
          %v769 = vsel %vm760, %v764, %v768
          %v770 = vmul.f32 %v718, %v755
          %v772 = vrot.slane %v770, 7
          %v774 = vsub.f32 %v594, %v772
          %v775 = vmul.f32 %v729, %v758
          %v777 = vrot.slane %v775, 7
          %v779 = vsub.f32 %v594, %v777
          %v780 = vlaneseq
          %v781 = vshrl.u32 %v780, 7
          %v782 = vsub.s32 3, %v781
          %v783 = vrot.slane %v774, %v782
          %v784 = vlaneseq
          %v785 = vshrl.u32 %v784, 7
          %v786 = vsub.s32 3, %v785
          %v787 = vrot.slane %v779, %v786
          %v788 = vsel %vm760, %v783, %v787
          %v789 = vmul.f32 %v705, %v769
          %v790 = vadd.f32 %v789, %v788
          %v791 = vmax.f32 %v790, 0.0
          %v792 = vpack.c.bf16 %v791, %v791
          %s793 = scalar_lea.vmem %s1, 128
          %v794 = vld [vmem:[%s793] sm:$0xf]
          %v795 = vld [vmem:[%s793 + $0x4] sm:$0xf]
          %v796 = vld [vmem:[%s793 + $0x8] sm:$0xf]
          %v797 = vld [vmem:[%s793 + $0xc] sm:$0xf]
          %v798 = vld [vmem:[%s793 + $0x10] sm:$0xf]
          %v799 = vld [vmem:[%s793 + $0x14] sm:$0xf]
          %v800 = vld [vmem:[%s793 + $0x18] sm:$0xf]
          %v801 = vld [vmem:[%s793 + $0x1c] sm:$0xf]
          %v802 = vld [vmem:[%s793 + $0x20] sm:$0xf]
          %v803 = vld [vmem:[%s793 + $0x24] sm:$0xf]
          %v804 = vld [vmem:[%s793 + $0x28] sm:$0xf]
          %v805 = vld [vmem:[%s793 + $0x2c] sm:$0xf]
          %v806 = vld [vmem:[%s793 + $0x30] sm:$0xf]
          %v807 = vld [vmem:[%s793 + $0x34] sm:$0xf]
          %v808 = vld [vmem:[%s793 + $0x38] sm:$0xf]
          %v809 = vld [vmem:[%s793 + $0x3c] sm:$0xf]
          %v810 = vlaneseq
          %v811 = vshrl.u32 %v810, 7
          %v812 = vsub.s32 4, %v811
          %v813 = vrot.slane %v594, %v812
          %v830 = vunpack.c.l.b16 %v794
          %v831 = vunpack.c.l.b16 %v795
          %v832 = vunpack.c.l.b16 %v796
          %v833 = vunpack.c.l.b16 %v797
          %v834 = vunpack.c.l.b16 %v798
          %v835 = vunpack.c.l.b16 %v799
          %v836 = vunpack.c.l.b16 %v800
          %v837 = vunpack.c.l.b16 %v801
          %v838 = vunpack.c.l.b16 %v802
          %v839 = vunpack.c.l.b16 %v803
          %v840 = vunpack.c.l.b16 %v804
          %v841 = vunpack.c.l.b16 %v805
          %v842 = vunpack.c.l.b16 %v806
          %v843 = vunpack.c.l.b16 %v807
          %v844 = vunpack.c.l.b16 %v808
          %v845 = vunpack.c.l.b16 %v809
          %v846 = vpack.c.b16 %v831, %v830
          %v847 = vpack.c.b16 %v833, %v832
          %v848 = vpack.c.b16 %v835, %v834
          %v849 = vpack.c.b16 %v837, %v836
          %v850 = vpack.c.b16 %v839, %v838
          %v851 = vpack.c.b16 %v841, %v840
          %v852 = vpack.c.b16 %v843, %v842
          %v853 = vpack.c.b16 %v845, %v844
          %862 = vmatprep.subr.bf16.mxu0 0
          %863 = vmatpush1.bf16.msra.mxu0 %v853
          %864 = vmatprep.subr.bf16.mxu0 0
          %865 = vmatpush1.bf16.msra.mxu0 %v852
          %866 = vmatprep.subr.bf16.mxu0 0
          %867 = vmatpush1.bf16.msra.mxu0 %v851
          %868 = vmatprep.subr.bf16.mxu0 0
          %869 = vmatpush1.bf16.msra.mxu0 %v850
          %870 = vmatprep.subr.bf16.mxu0 0
          %871 = vmatpush1.bf16.msra.mxu0 %v849
          %872 = vmatprep.subr.bf16.mxu0 0
          %873 = vmatpush1.bf16.msra.mxu0 %v848
          %874 = vmatprep.subr.bf16.mxu0 0
          %875 = vmatpush1.bf16.msra.mxu0 %v847
          %876 = vmatprep.subr.bf16.mxu0 0
          %877 = vmatpush1.bf16.msra.mxu0 %v846
          %878 = vmatprep.subr.bf16.mxu0 0
          %879 = vmatpush2.bf16.msra.mxu0 0
          %880 = vmatprep.subr.bf16.mxu0 0
          %881 = vmatpush2.bf16.msra.mxu0 0
          %882 = vmatprep.subr.bf16.mxu0 0
          %883 = vmatpush2.bf16.msra.mxu0 0
          %884 = vmatprep.subr.bf16.mxu0 0
          %885 = vmatpush2.bf16.msra.mxu0 0
          %886 = vmatprep.subr.bf16.mxu0 0
          %887 = vmatpush2.bf16.msra.mxu0 0
          %888 = vmatprep.subr.bf16.mxu0 0
          %889 = vmatpush2.bf16.msra.mxu0 0
          %890 = vmatprep.subr.bf16.mxu0 0
          %891 = vmatpush2.bf16.msra.mxu0 0
          %892 = vmatprep.subr.bf16.mxu0 0
          %893 = vmatpush2.bf16.msra.mxu0 0
          %894 = vmatprep.mubr.bf16.mxu0 0
          %895 = vmatmul.mubr.bf16.gmra.mxu0 %v792
          %v896 = vpop.f32.mrf.mxu0
          %v897 = vadd.f32 %v813, %v896
          %v898 = vpop.f32.mrf.mxu0
          %v899 = vpop.f32.mrf.mxu0
          %v900 = vpop.f32.mrf.mxu0
          %901 = vdwg.mxu0
          %v902 = vpack.c.bf16 %v897, %v897
          %s903 = scalar_lea.vmem %s1, 192
          %v904 = vld [vmem:[%s903] sm:$0xf]
          %v905 = vld [vmem:[%s903 + $0x4] sm:$0xf]
          %v906 = vld [vmem:[%s903 + $0x8] sm:$0xf]
          %v907 = vld [vmem:[%s903 + $0xc] sm:$0xf]
          %v908 = vld [vmem:[%s903 + $0x10] sm:$0xf]
          %v909 = vld [vmem:[%s903 + $0x14] sm:$0xf]
          %v910 = vld [vmem:[%s903 + $0x18] sm:$0xf]
          %v911 = vld [vmem:[%s903 + $0x1c] sm:$0xf]
          %v912 = vld [vmem:[%s903 + $0x20] sm:$0xf]
          %v913 = vld [vmem:[%s903 + $0x24] sm:$0xf]
          %v914 = vld [vmem:[%s903 + $0x28] sm:$0xf]
          %v915 = vld [vmem:[%s903 + $0x2c] sm:$0xf]
          %v916 = vld [vmem:[%s903 + $0x30] sm:$0xf]
          %v917 = vld [vmem:[%s903 + $0x34] sm:$0xf]
          %v918 = vld [vmem:[%s903 + $0x38] sm:$0xf]
          %v919 = vld [vmem:[%s903 + $0x3c] sm:$0xf]
          %v920 = vlaneseq
          %v921 = vshrl.u32 %v920, 7
          %v922 = vsub.s32 5, %v921
          %v923 = vrot.slane %v594, %v922
          %v940 = vunpack.c.l.b16 %v904
          %v941 = vunpack.c.l.b16 %v905
          %v942 = vunpack.c.l.b16 %v906
          %v943 = vunpack.c.l.b16 %v907
          %v944 = vunpack.c.l.b16 %v908
          %v945 = vunpack.c.l.b16 %v909
          %v946 = vunpack.c.l.b16 %v910
          %v947 = vunpack.c.l.b16 %v911
          %v948 = vunpack.c.l.b16 %v912
          %v949 = vunpack.c.l.b16 %v913
          %v950 = vunpack.c.l.b16 %v914
          %v951 = vunpack.c.l.b16 %v915
          %v952 = vunpack.c.l.b16 %v916
          %v953 = vunpack.c.l.b16 %v917
          %v954 = vunpack.c.l.b16 %v918
          %v955 = vunpack.c.l.b16 %v919
          %v956 = vpack.c.b16 %v941, %v940
          %v957 = vpack.c.b16 %v943, %v942
          %v958 = vpack.c.b16 %v945, %v944
          %v959 = vpack.c.b16 %v947, %v946
          %v960 = vpack.c.b16 %v949, %v948
          %v961 = vpack.c.b16 %v951, %v950
          %v962 = vpack.c.b16 %v953, %v952
          %v963 = vpack.c.b16 %v955, %v954
          %972 = vmatprep.subr.bf16.mxu0 0
          %973 = vmatpush1.bf16.msra.mxu0 %v963
          %974 = vmatprep.subr.bf16.mxu0 0
          %975 = vmatpush1.bf16.msra.mxu0 %v962
          %976 = vmatprep.subr.bf16.mxu0 0
          %977 = vmatpush1.bf16.msra.mxu0 %v961
          %978 = vmatprep.subr.bf16.mxu0 0
          %979 = vmatpush1.bf16.msra.mxu0 %v960
          %980 = vmatprep.subr.bf16.mxu0 0
          %981 = vmatpush1.bf16.msra.mxu0 %v959
          %982 = vmatprep.subr.bf16.mxu0 0
          %983 = vmatpush1.bf16.msra.mxu0 %v958
          %984 = vmatprep.subr.bf16.mxu0 0
          %985 = vmatpush1.bf16.msra.mxu0 %v957
          %986 = vmatprep.subr.bf16.mxu0 0
          %987 = vmatpush1.bf16.msra.mxu0 %v956
          %988 = vmatprep.subr.bf16.mxu0 0
          %989 = vmatpush2.bf16.msra.mxu0 0
          %990 = vmatprep.subr.bf16.mxu0 0
          %991 = vmatpush2.bf16.msra.mxu0 0
          %992 = vmatprep.subr.bf16.mxu0 0
          %993 = vmatpush2.bf16.msra.mxu0 0
          %994 = vmatprep.subr.bf16.mxu0 0
          %995 = vmatpush2.bf16.msra.mxu0 0
          %996 = vmatprep.subr.bf16.mxu0 0
          %997 = vmatpush2.bf16.msra.mxu0 0
          %998 = vmatprep.subr.bf16.mxu0 0
          %999 = vmatpush2.bf16.msra.mxu0 0
          %1000 = vmatprep.subr.bf16.mxu0 0
          %1001 = vmatpush2.bf16.msra.mxu0 0
          %1002 = vmatprep.subr.bf16.mxu0 0
          %1003 = vmatpush2.bf16.msra.mxu0 0
          %1004 = vmatprep.mubr.bf16.mxu0 0
          %1005 = vmatmul.mubr.bf16.gmra.mxu0 %v902
          %v1006 = vpop.f32.mrf.mxu0
          %v1007 = vadd.f32 %v923, %v1006
          %v1008 = vpop.f32.mrf.mxu0
          %v1009 = vpop.f32.mrf.mxu0
          %v1010 = vpop.f32.mrf.mxu0
          %1011 = vdwg.mxu0
          %v1012 = vsel %vm710, %v1007, 0.0
          %v1013 = vrot.slane %v1012, 4
          %v1014 = vadd.f32 %v1012, %v1013
          %v1015 = vrot.slane %v1014, 2
          %v1016 = vadd.f32 %v1014, %v1015
          %v1017 = vrot.slane %v1016, 1
          %v1018 = vadd.f32 %v1016, %v1017
          %v1019 = vmul.f32 %v1018, 0.25
          %v1021 = vrot.slane %v1007, 4
          %v1023 = vsel %vm710, %v1021, 0.0
          %v1024 = vrot.slane %v1023, 4
          %v1025 = vadd.f32 %v1023, %v1024
          %v1026 = vrot.slane %v1025, 2
          %v1027 = vadd.f32 %v1025, %v1026
          %v1028 = vrot.slane %v1027, 1
          %v1029 = vadd.f32 %v1027, %v1028
          %v1030 = vmul.f32 %v1029, 0.25
          %v1031 = vsub.f32 %v1007, %v1019
          %v1032 = vmul.f32 %v1031, %v1031
          %v1033 = vsel %vm710, %v1032, 0.0
          %v1034 = vrot.slane %v1033, 4
          %v1035 = vadd.f32 %v1033, %v1034
          %v1036 = vrot.slane %v1035, 2
          %v1037 = vadd.f32 %v1035, %v1036
          %v1038 = vrot.slane %v1037, 1
          %v1039 = vadd.f32 %v1037, %v1038
          %v1040 = vmul.f32 %v1039, 0.25
          %v1041 = vsub.f32 %v1007, %v1030
          %v1042 = vmul.f32 %v1041, %v1041
          %v1044 = vrot.slane %v1042, 4
          %v1046 = vsel %vm710, %v1044, 0.0
          %v1047 = vrot.slane %v1046, 4
          %v1048 = vadd.f32 %v1046, %v1047
          %v1049 = vrot.slane %v1048, 2
          %v1050 = vadd.f32 %v1048, %v1049
          %v1051 = vrot.slane %v1050, 1
          %v1052 = vadd.f32 %v1050, %v1051
          %v1053 = vmul.f32 %v1052, 0.25
          %v1054 = vadd.f32 %v1040, 1e-05
          %v1055 = vrsqrt.pop %v1054
          %v1056 = vmul.f32 %v594, %v1055
          %v1057 = vadd.f32 %v1053, 1e-05
          %v1058 = vrsqrt.pop %v1057
          %v1059 = vmul.f32 %v594, %v1058
          %v1060 = vlaneseq
          %v1061 = vshrl.u32 %v1060, 7
          %v1062 = vsub.s32 6, %v1061
          %v1063 = vrot.slane %v1056, %v1062
          %v1064 = vlaneseq
          %v1065 = vshrl.u32 %v1064, 7
          %v1066 = vsub.s32 6, %v1065
          %v1067 = vrot.slane %v1059, %v1066
          %v1068 = vsel %vm760, %v1063, %v1067
          %v1069 = vmul.f32 %v1019, %v1056
          %v1071 = vrot.slane %v1069, 7
          %v1073 = vsub.f32 %v594, %v1071
          %v1074 = vmul.f32 %v1030, %v1059
          %v1076 = vrot.slane %v1074, 7
          %v1078 = vsub.f32 %v594, %v1076
          %v1079 = vlaneseq
          %v1080 = vshrl.u32 %v1079, 7
          %v1081 = vsub.s32 7, %v1080
          %v1082 = vrot.slane %v1073, %v1081
          %v1083 = vlaneseq
          %v1084 = vshrl.u32 %v1083, 7
          %v1085 = vsub.s32 7, %v1084
          %v1086 = vrot.slane %v1078, %v1085
          %v1087 = vsel %vm760, %v1082, %v1086
          %v1088 = vmul.f32 %v1007, %v1068
          %v1089 = vadd.f32 %v1088, %v1087
          %v1090 = vmax.f32 %v1089, 0.0
          %v1091 = vpack.c.bf16 %v1090, %v1090
          %s1092 = scalar_lea.vmem %s1, 256
          %v1093 = vld [vmem:[%s1092] sm:$0xf]
          %v1094 = vld [vmem:[%s1092 + $0x4] sm:$0xf]
          %v1095 = vld [vmem:[%s1092 + $0x8] sm:$0xf]
          %v1096 = vld [vmem:[%s1092 + $0xc] sm:$0xf]
          %v1097 = vld [vmem:[%s1092 + $0x10] sm:$0xf]
          %v1098 = vld [vmem:[%s1092 + $0x14] sm:$0xf]
          %v1099 = vld [vmem:[%s1092 + $0x18] sm:$0xf]
          %v1100 = vld [vmem:[%s1092 + $0x1c] sm:$0xf]
          %v1101 = vld [vmem:[%s1092 + $0x20] sm:$0xf]
          %v1102 = vld [vmem:[%s1092 + $0x24] sm:$0xf]
          %v1103 = vld [vmem:[%s1092 + $0x28] sm:$0xf]
          %v1104 = vld [vmem:[%s1092 + $0x2c] sm:$0xf]
          %v1105 = vld [vmem:[%s1092 + $0x30] sm:$0xf]
          %v1106 = vld [vmem:[%s1092 + $0x34] sm:$0xf]
          %v1107 = vld [vmem:[%s1092 + $0x38] sm:$0xf]
          %v1108 = vld [vmem:[%s1092 + $0x3c] sm:$0xf]
          %v1109 = vlaneseq
          %v1110 = vshrl.u32 %v1109, 7
          %v1111 = vsub.s32 0, %v1110
          %v1112 = vrot.slane %v595, %v1111
          %v1129 = vunpack.c.l.b16 %v1093
          %v1130 = vunpack.c.l.b16 %v1094
          %v1131 = vunpack.c.l.b16 %v1095
          %v1132 = vunpack.c.l.b16 %v1096
          %v1133 = vunpack.c.l.b16 %v1097
          %v1134 = vunpack.c.l.b16 %v1098
          %v1135 = vunpack.c.l.b16 %v1099
          %v1136 = vunpack.c.l.b16 %v1100
          %v1137 = vunpack.c.l.b16 %v1101
          %v1138 = vunpack.c.l.b16 %v1102
          %v1139 = vunpack.c.l.b16 %v1103
          %v1140 = vunpack.c.l.b16 %v1104
          %v1141 = vunpack.c.l.b16 %v1105
          %v1142 = vunpack.c.l.b16 %v1106
          %v1143 = vunpack.c.l.b16 %v1107
          %v1144 = vunpack.c.l.b16 %v1108
          %v1145 = vpack.c.b16 %v1130, %v1129
          %v1146 = vpack.c.b16 %v1132, %v1131
          %v1147 = vpack.c.b16 %v1134, %v1133
          %v1148 = vpack.c.b16 %v1136, %v1135
          %v1149 = vpack.c.b16 %v1138, %v1137
          %v1150 = vpack.c.b16 %v1140, %v1139
          %v1151 = vpack.c.b16 %v1142, %v1141
          %v1152 = vpack.c.b16 %v1144, %v1143
          %1161 = vmatprep.subr.bf16.mxu0 0
          %1162 = vmatpush1.bf16.msra.mxu0 %v1152
          %1163 = vmatprep.subr.bf16.mxu0 0
          %1164 = vmatpush1.bf16.msra.mxu0 %v1151
          %1165 = vmatprep.subr.bf16.mxu0 0
          %1166 = vmatpush1.bf16.msra.mxu0 %v1150
          %1167 = vmatprep.subr.bf16.mxu0 0
          %1168 = vmatpush1.bf16.msra.mxu0 %v1149
          %1169 = vmatprep.subr.bf16.mxu0 0
          %1170 = vmatpush1.bf16.msra.mxu0 %v1148
          %1171 = vmatprep.subr.bf16.mxu0 0
          %1172 = vmatpush1.bf16.msra.mxu0 %v1147
          %1173 = vmatprep.subr.bf16.mxu0 0
          %1174 = vmatpush1.bf16.msra.mxu0 %v1146
          %1175 = vmatprep.subr.bf16.mxu0 0
          %1176 = vmatpush1.bf16.msra.mxu0 %v1145
          %1177 = vmatprep.subr.bf16.mxu0 0
          %1178 = vmatpush2.bf16.msra.mxu0 0
          %1179 = vmatprep.subr.bf16.mxu0 0
          %1180 = vmatpush2.bf16.msra.mxu0 0
          %1181 = vmatprep.subr.bf16.mxu0 0
          %1182 = vmatpush2.bf16.msra.mxu0 0
          %1183 = vmatprep.subr.bf16.mxu0 0
          %1184 = vmatpush2.bf16.msra.mxu0 0
          %1185 = vmatprep.subr.bf16.mxu0 0
          %1186 = vmatpush2.bf16.msra.mxu0 0
          %1187 = vmatprep.subr.bf16.mxu0 0
          %1188 = vmatpush2.bf16.msra.mxu0 0
          %1189 = vmatprep.subr.bf16.mxu0 0
          %1190 = vmatpush2.bf16.msra.mxu0 0
          %1191 = vmatprep.subr.bf16.mxu0 0
          %1192 = vmatpush2.bf16.msra.mxu0 0
          %1193 = vmatprep.mubr.bf16.mxu0 0
          %1194 = vmatmul.mubr.bf16.gmra.mxu0 %v1091
          %v1195 = vpop.f32.mrf.mxu0
          %v1196 = vadd.f32 %v1112, %v1195
          %v1197 = vpop.f32.mrf.mxu0
          %v1198 = vpop.f32.mrf.mxu0
          %v1199 = vpop.f32.mrf.mxu0
          %1200 = vdwg.mxu0
          %v1201 = vlaneseq
          %v1202 = vand.u32 %v1201, 127
          %vm1203 = vcmp.lt.s32.totalorder %v1202, 32
          %v1204 = vsel %vm1203, 1, 0
          %v1205 = vcvt.s32.f32 %v1204
          %v1206 = vmul.f32 %v897, %v1205
          %v1207 = vmul.f32 %v1196, %v1196
          %1208 = vadd.xlane.f32.xlu0 %v1207
          %v1209 = vpop.xlane.xlu0 %1208
          %v1210 = vmax.f32 %v1209, 1e-24
          %v1211 = vrsqrt.pop %v1210
          %v1212 = vmul.f32 %v1196, %v1211
          %v1213 = vmul.f32 %v1206, %v1206
          %1214 = vadd.xlane.f32.xlu0 %v1213
          %v1215 = vpop.xlane.xlu0 %1214
          %v1216 = vmax.f32 %v1215, 1e-24
          %v1217 = vrsqrt.pop %v1216
          %v1218 = vmul.f32 %v1206, %v1217
          %v1219 = vrot.slane %v1218, 4
          %v1220 = vmul.f32 %v1212, %v1219
          %1221 = vadd.xlane.f32.xlu0 %v1220
          %v1222 = vpop.xlane.xlu0 %1221
          %v1223 = vrot.slane %v1222, 4
          %v1224 = vadd.f32 %v1222, %v1223
          %v1225 = vrot.slane %v1224, 2
          %v1226 = vadd.f32 %v1224, %v1225
          %v1227 = vrot.slane %v1226, 1
          %v1228 = vadd.f32 %v1226, %v1227
          %v1229 = vmul.f32 %v1228, -0.5
          %1230 = vst [vmem:[#allocation3] sm:$0x1] %v1229
        $region36: #{byol_forward_train.1} parent=31 // pred_fallthru
          _
        // Predicated region
        $region37: #{byol_forward_train.1} parent=31 // pred_check
          %p1231 = pneg %p96
        $region38: #{byol_forward_train.1} parent=31 // pred_check_branch
          %1233 = sbr.rel (%p1231) target = $region40
        $region39: #{byol_forward_train.1} parent=31 // pred_region
          %s1235 = ssub.s32 16, 16
          %1236 = vsyncadd [#allocation4], %s1235
          %s1238 = sshll.u32 [#allocation3], 4
          %s1239 = int_to_ptr.vmem [resolvable:$true] %s1238
          %1241 = dma.vmem_to_hbm [thread:$0]  %s1239, 16, %s3, [#allocation4]
        $region40: #{byol_forward_train.1} parent=31 // pred_fallthru
          _
        // Predicated region
        $region41: #{byol_forward_train.1} parent=31 // pred_check
          %p1242 = pneg %p96
        $region42: #{byol_forward_train.1} parent=31 // pred_check_branch
          %1244 = sbr.rel (%p1242) target = $region44
        $region43: #{byol_forward_train.1} parent=31 // pred_region
          %1245 = dma.done [#allocation4], 16
        $region44: #{byol_forward_train.1} parent=31 // pred_fallthru
          _
      $region32: #{byol_forward_train.1} parent=5 // pred_fallthru
        _
      %p1246 = scmp.le.s32.totalorder 2, %s10
      // Predicated region
      $region45: #{byol_forward_train.1} parent=5 // pred_check
        %p1247 = pneg %p1246
      $region46: #{byol_forward_train.1} parent=5 // pred_check_branch
        %1249 = sbr.rel (%p1247) target = $region48
      $region47: #{byol_forward_train.1} parent=5 // pred_region
        %s1250 = ssub.s32 %s10, 2
      $region48: #{byol_forward_train.1} parent=5 // pred_fallthru
        _
    $region6: #{byol_forward_train.1} parent=1 // loop_footer
      %s14 = sadd.s32 1, %s10
    $region7: #{byol_forward_train.1} parent=1 // loop_footer_branch
      %9 = sbr.rel target = $region3
    $region8: #{byol_forward_train.1} parent=1 // loop_exit
      _
    %1251 = vsyncpa [#allocation4], 1
    %s1252 = scalar_lea.sflag [#allocation4], 1
    %1253 = vsyncpa %s1252, 1

</llo_original>
